<compile_context>
chip_gen: v7x
topology: tpu7x:2x2x1
jax: 0.10.0
libtpu: 0.0.40
codegen_flags: <defaults>
</compile_context>

<pallas_src>
import functools

import jax
import jax.numpy as jnp
from jax.experimental import pallas as pl
from jax.experimental.pallas import tpu as pltpu

EPS = 1e-5
KSIZE = 5
PAD = 2
MXU_DTYPE = jnp.bfloat16        # matmul operand dtype (accumulation stays f32)


@functools.lru_cache(maxsize=1)
def _vmem_limit_bytes():
    """Generation-aware VMEM budget: ~80% of physical (v5e/v6e 128 MiB, v7x 64 MiB)."""
    try:
        cap = int(pltpu.get_tpu_info().vmem_capacity_bytes)
    except Exception:
        cap = 64 * 1024 * 1024          # conservative (v7x-sized) fallback
    return int(cap * 0.8)


# ----------------------------------------------------------------------------- kernel
def _double_conv_kernel(x_ref, w1_ref, g1_ref, be1_ref, w2_ref, g2_ref, be2_ref,
                        o_ref, xh1_ref, xh2_ref, act1_ref, act2_ref, s1_ref, s2_ref):
    """Phase-tiled fused (Conv1d k=5 p=2 -> BN(batch stats) -> ReLU) x 2.

    Grid = (phase, batch_tile).  Layout is (N, C, L): channels on sublanes, L on lanes.

    x_ref   : (1, Cin, L)             one batch element (consumed in phase 0 only)
    w1_ref  : (K, Cout, Cin)   bf16   per-tap conv1 weights
    w2_ref  : (K, Cout, Cout)  bf16   per-tap conv2 weights
    g*/be*  : (Cout, 1)        f32    BN gamma / beta
    o_ref   : (1, Cout, L)            output tile (written in phase 2 only)
    xh1/xh2 : (Cin/Cout, L+4)  bf16   VMEM conv halo scratch (edges stay zero)
    act1/2  : (N, Cout, L)     f32    pre-BN conv outputs, held across phases
    s1/s2   : (2*Cout, 1)      f32    accumulated [sum; sumsq] per channel
    """
    phase = pl.program_id(0)
    tile = pl.program_id(1)

    N, Cout, L = act1_ref.shape
    inv_cnt = 1.0 / (N * L)

    def conv5(w_ref, xh_ref):
        # K accumulating MXU matmuls reading the halo scratch in place (no im2col
        # buffer); bf16 operands, f32 accumulation.
        y = jnp.zeros((Cout, L), jnp.float32)
        for k in range(KSIZE):
            y = y + jnp.dot(w_ref[k], xh_ref[:, k:k + L],
                            preferred_element_type=jnp.float32)
        return y

    def accumulate_stats(s_ref, y):
        # Single fused reduction pass: [sum; sumsq] stacked on sublanes.
        s_ref[...] += jnp.sum(jnp.concatenate([y, y * y], axis=0),
                              axis=1, keepdims=True)

    def bn_coeffs(s_ref, g_ref, be_ref):
        s = s_ref[...]
        mean = s[:Cout] * inv_cnt
        var = jnp.maximum(s[Cout:] * inv_cnt - mean * mean, 0.0)   # clamp cancellation
        scale = g_ref[...] * jax.lax.rsqrt(var + EPS)
        shift = be_ref[...] - mean * scale
        return scale, shift

    @pl.when(jnp.logical_and(phase == 0, tile == 0))
    def _init():
        s1_ref[...] = jnp.zeros_like(s1_ref)
        s2_ref[...] = jnp.zeros_like(s2_ref)
        # Zero the conv halo edges once; only the interiors are rewritten per tile.
        for ref in (xh1_ref, xh2_ref):
            c = ref.shape[0]
            ref[:, :PAD] = jnp.zeros((c, PAD), ref.dtype)
            ref[:, L + PAD:] = jnp.zeros((c, PAD), ref.dtype)

    @pl.when(phase == 0)                       # conv1 + BN1 partial stats
    def _phase0():
        xh1_ref[:, PAD:PAD + L] = x_ref[0].astype(xh1_ref.dtype)
        y1 = conv5(w1_ref, xh1_ref)            # conv bias dropped: cancels in BN
        act1_ref[tile] = y1
        accumulate_stats(s1_ref, y1)

    @pl.when(phase == 1)                       # BN1+ReLU -> conv2 + BN2 partial stats
    def _phase1():
        scale, shift = bn_coeffs(s1_ref, g1_ref, be1_ref)
        a1 = jnp.maximum(act1_ref[tile] * scale + shift, 0.0)
        xh2_ref[:, PAD:PAD + L] = a1.astype(xh2_ref.dtype)
        y2 = conv5(w2_ref, xh2_ref)
        act2_ref[tile] = y2
        accumulate_stats(s2_ref, y2)

    @pl.when(phase == 2)                       # BN2+ReLU -> lane-dense output store
    def _phase2():
        scale, shift = bn_coeffs(s2_ref, g2_ref, be2_ref)
        o_ref[0] = jnp.maximum(act2_ref[tile] * scale + shift,
                               0.0).astype(o_ref.dtype)


def _fused_double_conv(x, w1f, g1, be1, w2f, g2, be2):
    """x: (N, Cin, L); weights already per-tap (K, Cout, Cin/Cout) and bf16."""
    N, Cin, L = x.shape
    Cout = w1f.shape[1]

    def const(shape):
        return pl.BlockSpec(shape, lambda p, t: (0,) * len(shape))

    return pl.pallas_call(
        _double_conv_kernel,
        out_shape=jax.ShapeDtypeStruct((N, Cout, L), x.dtype),
        grid_spec=pltpu.PrefetchScalarGridSpec(
            num_scalar_prefetch=0,
            grid=(3, N),                        # (phase, batch tile)
            in_specs=[
                # x is only consumed in phase 0; pin later phases to block 0 so the
                # pipeline does not keep re-fetching it.
                pl.BlockSpec((1, Cin, L),
                             lambda p, t: (jnp.where(p == 0, t, 0), 0, 0)),
                const((KSIZE, Cout, Cin)),
                const((Cout, 1)), const((Cout, 1)),
                const((KSIZE, Cout, Cout)),
                const((Cout, 1)), const((Cout, 1)),
            ],
            # Output is produced in phase 2 only; pinning earlier phases to block 0
            # means each un-padded output tile is DMA'd to HBM exactly once.
            out_specs=pl.BlockSpec((1, Cout, L),
                                   lambda p, t: (jnp.where(p == 2, t, 0), 0, 0)),
            scratch_shapes=[
                pltpu.VMEM((Cin, L + 2 * PAD), MXU_DTYPE),    # conv1 halo (bf16)
                pltpu.VMEM((Cout, L + 2 * PAD), MXU_DTYPE),   # conv2 halo (bf16)
                pltpu.VMEM((N, Cout, L), jnp.float32),        # pre-BN1 activations
                pltpu.VMEM((N, Cout, L), jnp.float32),        # pre-BN2 activations
                pltpu.VMEM((2 * Cout, 1), jnp.float32),       # BN1 [sum; sumsq]
                pltpu.VMEM((2 * Cout, 1), jnp.float32),       # BN2 [sum; sumsq]
            ],
        ),
        compiler_params=pltpu.CompilerParams(
            # Phases and the batch-stats reduction are sequential dependencies.
            # TODO(synk): v7x 2-TC split needs a cross-core (CMEM) stats reduction.
            dimension_semantics=("arbitrary", "arbitrary"),
            vmem_limit_bytes=_vmem_limit_bytes(),
        ),
    )(x, w1f, g1, be1, w2f, g2, be2)


@jax.jit
def double_conv(x_ncl, params):
    """PyTorch-style interface: x_ncl is (N, C_in, L); returns (N, C_out, L)."""
    w1, b1, g1, be1, w2, b2, g2, be2 = params
    del b1, b2          # conv biases cancel exactly against BN's batch-mean subtraction
    Cout = w1.shape[0]

    # Per-tap weight layout (K, Cout, Cin); pre-cast to bf16 (MXU operand dtype) so the
    # kernel does no weight casts and weight HBM->VMEM DMA is halved.
    w1f = jnp.transpose(w1, (2, 0, 1)).astype(MXU_DTYPE)
    w2f = jnp.transpose(w2, (2, 0, 1)).astype(MXU_DTYPE)

    def col(v):
        return v.reshape(Cout, 1).astype(jnp.float32)

    return _fused_double_conv(x_ncl, w1f, col(g1), col(be1), w2f, col(g2), col(be2))


# -------------------------------------------------------------------------- reference
def _reference_double_conv(x_ncl, params):
    """Pure-JAX f32 reference (same semantics as the PyTorch module in train mode)."""
    w1, b1, g1, be1, w2, b2, g2, be2 = params

    def block(x, w, b, g, beta):
        y = jax.lax.conv_general_dilated(
            x, w, window_strides=(1,), padding=((PAD, PAD),),
            dimension_numbers=("NCH", "OIH", "NCH"),
        )
        y = y + b[None, :, None]
        mean = jnp.mean(y, axis=(0, 2), keepdims=True)
        var = jnp.mean(jnp.square(y - mean), axis=(0, 2), keepdims=True)
        y = g[None, :, None] * (y - mean) * jax.lax.rsqrt(var + EPS) + beta[None, :, None]
        return jnp.maximum(y, 0.0)

    y = block(x_ncl, w1, b1, g1, be1)
    y = block(y, w2, b2, g2, be2)
    return y


def init_params(key, in_channels, out_channels):
    k1, k2, k3, k4 = jax.random.split(key, 4)
    w1 = 0.1 * jax.random.normal(k1, (out_channels, in_channels, KSIZE), jnp.float32)
    b1 = 0.1 * jax.random.normal(k2, (out_channels,), jnp.float32)
    w2 = 0.1 * jax.random.normal(k3, (out_channels, out_channels, KSIZE), jnp.float32)
    b2 = 0.1 * jax.random.normal(k4, (out_channels,), jnp.float32)
    # BatchNorm init matches PyTorch defaults: gamma=1, beta=0.
    g1 = jnp.ones((out_channels,), jnp.float32)
    be1 = jnp.zeros((out_channels,), jnp.float32)
    g2 = jnp.ones((out_channels,), jnp.float32)
    be2 = jnp.zeros((out_channels,), jnp.float32)
    return (w1, b1, g1, be1, w2, b2, g2, be2)


if __name__ == "__main__":
    key = jax.random.PRNGKey(0)
    kx, kp = jax.random.split(key)

    N, C_IN, C_OUT, L = 2, 4, 8, 16
    x = jax.random.normal(kx, (N, C_IN, L), jnp.float32)      # PyTorch NCL input
    params = init_params(kp, C_IN, C_OUT)

    out = jax.block_until_ready(double_conv(x, params))
    ref = _reference_double_conv(x, params)

    assert out.shape == (N, C_OUT, L)
    # bf16 MXU operands (f32 accumulate) => small, bounded deviation vs the f32 ref.
    assert jnp.allclose(out, ref, atol=5e-2, rtol=5e-2), "mismatch vs f32 reference"

    print("KERNEL_OK")
</pallas_src>

<mosaic_0001>
module attributes {stable_mosaic.version = 11 : i64} {
  func.func @_double_conv_kernel(%arg0: i32, %arg1: i32, %arg2: memref<1x4x16xf32, #tpu.memory_space<vmem>>, %arg3: memref<5x8x4xbf16, #tpu.memory_space<vmem>>, %arg4: memref<8x1xf32, #tpu.memory_space<vmem>>, %arg5: memref<8x1xf32, #tpu.memory_space<vmem>>, %arg6: memref<5x8x8xbf16, #tpu.memory_space<vmem>>, %arg7: memref<8x1xf32, #tpu.memory_space<vmem>>, %arg8: memref<8x1xf32, #tpu.memory_space<vmem>>, %arg9: memref<1x8x16xf32, #tpu.memory_space<vmem>>, %arg10: memref<4x20xbf16, #tpu.memory_space<vmem>>, %arg11: memref<8x20xbf16, #tpu.memory_space<vmem>>, %arg12: memref<2x8x16xf32, #tpu.memory_space<vmem>>, %arg13: memref<2x8x16xf32, #tpu.memory_space<vmem>>, %arg14: memref<16x1xf32, #tpu.memory_space<vmem>>, %arg15: memref<16x1xf32, #tpu.memory_space<vmem>>) attributes {dimension_semantics = [#tpu.dimension_semantics<arbitrary>, #tpu.dimension_semantics<arbitrary>], iteration_bounds = array<i64: 3, 2>, scalar_prefetch = 0 : i64, scratch_operands = 6 : i64, tpu.core_type = #tpu.core_type<tc>, window_params = [{transform_indices = @transform_0, window_bounds = array<i64: 1, 4, 16>}, {pipeline_mode = #tpu.pipeline_mode<synchronous>, transform_indices = @transform_1, window_bounds = array<i64: 5, 8, 4>}, {pipeline_mode = #tpu.pipeline_mode<synchronous>, transform_indices = @transform_2, window_bounds = array<i64: 8, 1>}, {pipeline_mode = #tpu.pipeline_mode<synchronous>, transform_indices = @transform_3, window_bounds = array<i64: 8, 1>}, {pipeline_mode = #tpu.pipeline_mode<synchronous>, transform_indices = @transform_4, window_bounds = array<i64: 5, 8, 8>}, {pipeline_mode = #tpu.pipeline_mode<synchronous>, transform_indices = @transform_5, window_bounds = array<i64: 8, 1>}, {pipeline_mode = #tpu.pipeline_mode<synchronous>, transform_indices = @transform_6, window_bounds = array<i64: 8, 1>}, {transform_indices = @transform_7, window_bounds = array<i64: 1, 8, 16>}]} {
    %c0_i32 = arith.constant 0 : i32
    %0 = arith.cmpi eq, %arg0, %c0_i32 : i32
    %c0_i32_0 = arith.constant 0 : i32
    %1 = arith.cmpi eq, %arg1, %c0_i32_0 : i32
    %2 = arith.andi %0, %1 : i1
    %3 = arith.extui %2 : i1 to i32
    %c0_i32_1 = arith.constant 0 : i32
    %4 = arith.cmpi ne, %3, %c0_i32_1 : i32
    scf.if %4 {
      %cst = arith.constant 0.000000e+00 : f32
      %14 = vector.broadcast %cst : f32 to vector<16x1xf32>
      %c0 = arith.constant 0 : index
      %c0_6 = arith.constant 0 : index
      %15 = vector.load %arg14[%c0, %c0_6] : memref<16x1xf32, #tpu.memory_space<vmem>>, vector<16x1xf32>
      tpu.vector_store %arg14[%c0, %c0_6], %14 {strides = array<i32>} : memref<16x1xf32, #tpu.memory_space<vmem>>, vector<16x1xf32>,
      %cst_7 = arith.constant 0.000000e+00 : f32
      %16 = vector.broadcast %cst_7 : f32 to vector<16x1xf32>
      %c0_8 = arith.constant 0 : index
      %c0_9 = arith.constant 0 : index
      %17 = vector.load %arg15[%c0_8, %c0_9] : memref<16x1xf32, #tpu.memory_space<vmem>>, vector<16x1xf32>
      tpu.vector_store %arg15[%c0_8, %c0_9], %16 {strides = array<i32>} : memref<16x1xf32, #tpu.memory_space<vmem>>, vector<16x1xf32>,
      %cst_10 = arith.constant 0.000000e+00 : bf16
      %18 = vector.broadcast %cst_10 : bf16 to vector<4x2xbf16>
      %c0_11 = arith.constant 0 : index
      %c0_12 = arith.constant 0 : index
      %19 = vector.load %arg10[%c0_11, %c0_12] : memref<4x20xbf16, #tpu.memory_space<vmem>>, vector<4x2xbf16>
      tpu.vector_store %arg10[%c0_11, %c0_12], %18 {strides = array<i32>} : memref<4x20xbf16, #tpu.memory_space<vmem>>, vector<4x2xbf16>,
      %cst_13 = arith.constant 0.000000e+00 : bf16
      %20 = vector.broadcast %cst_13 : bf16 to vector<4x2xbf16>
      %c0_14 = arith.constant 0 : index
      %c18 = arith.constant 18 : index
      %21 = vector.load %arg10[%c0_14, %c18] : memref<4x20xbf16, #tpu.memory_space<vmem>>, vector<4x2xbf16>
      tpu.vector_store %arg10[%c0_14, %c18], %20 {strides = array<i32>} : memref<4x20xbf16, #tpu.memory_space<vmem>>, vector<4x2xbf16>,
      %cst_15 = arith.constant 0.000000e+00 : bf16
      %22 = vector.broadcast %cst_15 : bf16 to vector<8x2xbf16>
      %c0_16 = arith.constant 0 : index
      %c0_17 = arith.constant 0 : index
      %23 = vector.load %arg11[%c0_16, %c0_17] : memref<8x20xbf16, #tpu.memory_space<vmem>>, vector<8x2xbf16>
      tpu.vector_store %arg11[%c0_16, %c0_17], %22 {strides = array<i32>} : memref<8x20xbf16, #tpu.memory_space<vmem>>, vector<8x2xbf16>,
      %cst_18 = arith.constant 0.000000e+00 : bf16
      %24 = vector.broadcast %cst_18 : bf16 to vector<8x2xbf16>
      %c0_19 = arith.constant 0 : index
      %c18_20 = arith.constant 18 : index
      %25 = vector.load %arg11[%c0_19, %c18_20] : memref<8x20xbf16, #tpu.memory_space<vmem>>, vector<8x2xbf16>
      tpu.vector_store %arg11[%c0_19, %c18_20], %24 {strides = array<i32>} : memref<8x20xbf16, #tpu.memory_space<vmem>>, vector<8x2xbf16>,
    } else {
    }
    %c0_i32_2 = arith.constant 0 : i32
    %5 = arith.cmpi eq, %arg0, %c0_i32_2 : i32
    %6 = arith.extui %5 : i1 to i32
    %c0_i32_3 = arith.constant 0 : i32
    %7 = arith.cmpi ne, %6, %c0_i32_3 : i32
    scf.if %7 {
      %c0 = arith.constant 0 : index
      %c0_6 = arith.constant 0 : index
      %c0_7 = arith.constant 0 : index
      %14 = vector.load %arg2[%c0, %c0_6, %c0_7] : memref<1x4x16xf32, #tpu.memory_space<vmem>>, vector<1x4x16xf32>
      %15 = vector.shape_cast %14 : vector<1x4x16xf32> to vector<4x16xf32>
      %16 = arith.truncf %15 : vector<4x16xf32> to vector<4x16xbf16>
      %c0_8 = arith.constant 0 : index
      %c2 = arith.constant 2 : index
      %17 = vector.load %arg10[%c0_8, %c2] : memref<4x20xbf16, #tpu.memory_space<vmem>>, vector<4x16xbf16>
      tpu.vector_store %arg10[%c0_8, %c2], %16 {strides = array<i32>} : memref<4x20xbf16, #tpu.memory_space<vmem>>, vector<4x16xbf16>,
      %cst = arith.constant 0.000000e+00 : f32
      %18 = vector.broadcast %cst : f32 to vector<8x16xf32>
      %c0_9 = arith.constant 0 : index
      %c0_10 = arith.constant 0 : index
      %c0_11 = arith.constant 0 : index
      %19 = vector.load %arg3[%c0_9, %c0_10, %c0_11] : memref<5x8x4xbf16, #tpu.memory_space<vmem>>, vector<1x8x4xbf16>
      %20 = vector.shape_cast %19 : vector<1x8x4xbf16> to vector<8x4xbf16>
      %c0_12 = arith.constant 0 : index
      %c0_13 = arith.constant 0 : index
      %21 = vector.load %arg10[%c0_12, %c0_13] : memref<4x20xbf16, #tpu.memory_space<vmem>>, vector<4x16xbf16>
      %cst_14 = arith.constant dense<0.000000e+00> : vector<8x16xf32>
      %22 = tpu.matmul %20, %21, %cst_14 {dimension_numbers = #tpu.dot_dimension_numbers<[1], [0], [0], [1], [0, 0, 1, 1], [], []>} : vector<8x4xbf16>, vector<4x16xbf16>, vector<8x16xf32> -> vector<8x16xf32>
      %23 = arith.addf %18, %22 : vector<8x16xf32>
      %c1 = arith.constant 1 : index
      %c0_15 = arith.constant 0 : index
      %c0_16 = arith.constant 0 : index
      %24 = vector.load %arg3[%c1, %c0_15, %c0_16] : memref<5x8x4xbf16, #tpu.memory_space<vmem>>, vector<1x8x4xbf16>
      %25 = vector.shape_cast %24 : vector<1x8x4xbf16> to vector<8x4xbf16>
      %c0_17 = arith.constant 0 : index
      %c1_18 = arith.constant 1 : index
      %26 = vector.load %arg10[%c0_17, %c1_18] : memref<4x20xbf16, #tpu.memory_space<vmem>>, vector<4x16xbf16>
      %cst_19 = arith.constant dense<0.000000e+00> : vector<8x16xf32>
      %27 = tpu.matmul %25, %26, %cst_19 {dimension_numbers = #tpu.dot_dimension_numbers<[1], [0], [0], [1], [0, 0, 1, 1], [], []>} : vector<8x4xbf16>, vector<4x16xbf16>, vector<8x16xf32> -> vector<8x16xf32>
      %28 = arith.addf %23, %27 : vector<8x16xf32>
      %c2_20 = arith.constant 2 : index
      %c0_21 = arith.constant 0 : index
      %c0_22 = arith.constant 0 : index
      %29 = vector.load %arg3[%c2_20, %c0_21, %c0_22] : memref<5x8x4xbf16, #tpu.memory_space<vmem>>, vector<1x8x4xbf16>
      %30 = vector.shape_cast %29 : vector<1x8x4xbf16> to vector<8x4xbf16>
      %c0_23 = arith.constant 0 : index
      %c2_24 = arith.constant 2 : index
      %31 = vector.load %arg10[%c0_23, %c2_24] : memref<4x20xbf16, #tpu.memory_space<vmem>>, vector<4x16xbf16>
      %cst_25 = arith.constant dense<0.000000e+00> : vector<8x16xf32>
      %32 = tpu.matmul %30, %31, %cst_25 {dimension_numbers = #tpu.dot_dimension_numbers<[1], [0], [0], [1], [0, 0, 1, 1], [], []>} : vector<8x4xbf16>, vector<4x16xbf16>, vector<8x16xf32> -> vector<8x16xf32>
      %33 = arith.addf %28, %32 : vector<8x16xf32>
      %c3 = arith.constant 3 : index
      %c0_26 = arith.constant 0 : index
      %c0_27 = arith.constant 0 : index
      %34 = vector.load %arg3[%c3, %c0_26, %c0_27] : memref<5x8x4xbf16, #tpu.memory_space<vmem>>, vector<1x8x4xbf16>
      %35 = vector.shape_cast %34 : vector<1x8x4xbf16> to vector<8x4xbf16>
      %c0_28 = arith.constant 0 : index
      %c3_29 = arith.constant 3 : index
      %36 = vector.load %arg10[%c0_28, %c3_29] : memref<4x20xbf16, #tpu.memory_space<vmem>>, vector<4x16xbf16>
      %cst_30 = arith.constant dense<0.000000e+00> : vector<8x16xf32>
      %37 = tpu.matmul %35, %36, %cst_30 {dimension_numbers = #tpu.dot_dimension_numbers<[1], [0], [0], [1], [0, 0, 1, 1], [], []>} : vector<8x4xbf16>, vector<4x16xbf16>, vector<8x16xf32> -> vector<8x16xf32>
      %38 = arith.addf %33, %37 : vector<8x16xf32>
      %c4 = arith.constant 4 : index
      %c0_31 = arith.constant 0 : index
      %c0_32 = arith.constant 0 : index
      %39 = vector.load %arg3[%c4, %c0_31, %c0_32] : memref<5x8x4xbf16, #tpu.memory_space<vmem>>, vector<1x8x4xbf16>
      %40 = vector.shape_cast %39 : vector<1x8x4xbf16> to vector<8x4xbf16>
      %c0_33 = arith.constant 0 : index
      %c4_34 = arith.constant 4 : index
      %41 = vector.load %arg10[%c0_33, %c4_34] : memref<4x20xbf16, #tpu.memory_space<vmem>>, vector<4x16xbf16>
      %cst_35 = arith.constant dense<0.000000e+00> : vector<8x16xf32>
      %42 = tpu.matmul %40, %41, %cst_35 {dimension_numbers = #tpu.dot_dimension_numbers<[1], [0], [0], [1], [0, 0, 1, 1], [], []>} : vector<8x4xbf16>, vector<4x16xbf16>, vector<8x16xf32> -> vector<8x16xf32>
      %43 = arith.addf %38, %42 : vector<8x16xf32>
      %44 = arith.index_cast %arg1 : i32 to index
      %c0_36 = arith.constant 0 : index
      %c0_37 = arith.constant 0 : index
      %45 = vector.load %arg12[%44, %c0_36, %c0_37] : memref<2x8x16xf32, #tpu.memory_space<vmem>>, vector<1x8x16xf32>
      %46 = vector.shape_cast %45 : vector<1x8x16xf32> to vector<8x16xf32>
      %47 = vector.shape_cast %43 : vector<8x16xf32> to vector<1x8x16xf32>
      tpu.vector_store %arg12[%44, %c0_36, %c0_37], %47 {strides = array<i32>} : memref<2x8x16xf32, #tpu.memory_space<vmem>>, vector<1x8x16xf32>,
      %c0_38 = arith.constant 0 : index
      %c0_39 = arith.constant 0 : index
      %48 = vector.load %arg14[%c0_38, %c0_39] : memref<16x1xf32, #tpu.memory_space<vmem>>, vector<16x1xf32>
      %49 = arith.mulf %43, %43 : vector<8x16xf32>
      %50 = tpu.concatenate %43, %49 in 0 : vector<8x16xf32>, vector<8x16xf32> -> vector<16x16xf32>
      %cst_40 = arith.constant dense<0.000000e+00> : vector<16xf32>
      %51 = vector.multi_reduction <add>, %50, %cst_40 [1] : vector<16x16xf32> to vector<16xf32>
      %52 = vector.shape_cast %51 : vector<16xf32> to vector<16x1xf32>
      %53 = arith.addf %48, %52 : vector<16x1xf32>
      %c0_41 = arith.constant 0 : index
      %c0_42 = arith.constant 0 : index
      %54 = vector.load %arg14[%c0_41, %c0_42] : memref<16x1xf32, #tpu.memory_space<vmem>>, vector<16x1xf32>
      tpu.vector_store %arg14[%c0_41, %c0_42], %53 {strides = array<i32>} : memref<16x1xf32, #tpu.memory_space<vmem>>, vector<16x1xf32>,
    } else {
    }
    %c1_i32 = arith.constant 1 : i32
    %8 = arith.cmpi eq, %arg0, %c1_i32 : i32
    %9 = arith.extui %8 : i1 to i32
    %c0_i32_4 = arith.constant 0 : i32
    %10 = arith.cmpi ne, %9, %c0_i32_4 : i32
    scf.if %10 {
      %c0 = arith.constant 0 : index
      %c0_6 = arith.constant 0 : index
      %14 = vector.load %arg14[%c0, %c0_6] : memref<16x1xf32, #tpu.memory_space<vmem>>, vector<16x1xf32>
      %15 = vector.extract_strided_slice %14 {offsets = [0, 0], sizes = [8, 1], strides = [1, 1]} : vector<16x1xf32> to vector<8x1xf32>
      %cst = arith.constant 3.125000e-02 : f32
      %16 = vector.broadcast %cst : f32 to vector<8x1xf32>
      %17 = arith.mulf %15, %16 : vector<8x1xf32>
      %18 = vector.extract_strided_slice %14 {offsets = [8, 0], sizes = [8, 1], strides = [1, 1]} : vector<16x1xf32> to vector<8x1xf32>
      %cst_7 = arith.constant 3.125000e-02 : f32
      %19 = vector.broadcast %cst_7 : f32 to vector<8x1xf32>
      %20 = arith.mulf %18, %19 : vector<8x1xf32>
      %21 = arith.mulf %17, %17 : vector<8x1xf32>
      %22 = arith.subf %20, %21 : vector<8x1xf32>
      %cst_8 = arith.constant 0.000000e+00 : f32
      %23 = vector.broadcast %cst_8 : f32 to vector<8x1xf32>
      %24 = arith.maximumf %22, %23 : vector<8x1xf32>
      %c0_9 = arith.constant 0 : index
      %c0_10 = arith.constant 0 : index
      %25 = vector.load %arg4[%c0_9, %c0_10] : memref<8x1xf32, #tpu.memory_space<vmem>>, vector<8x1xf32>
      %cst_11 = arith.constant 9.99999974E-6 : f32
      %26 = vector.broadcast %cst_11 : f32 to vector<8x1xf32>
      %27 = arith.addf %24, %26 : vector<8x1xf32>
      %28 = math.rsqrt %27 : vector<8x1xf32>
      %29 = arith.mulf %25, %28 : vector<8x1xf32>
      %c0_12 = arith.constant 0 : index
      %c0_13 = arith.constant 0 : index
      %30 = vector.load %arg5[%c0_12, %c0_13] : memref<8x1xf32, #tpu.memory_space<vmem>>, vector<8x1xf32>
      %31 = arith.mulf %17, %29 : vector<8x1xf32>
      %32 = arith.subf %30, %31 : vector<8x1xf32>
      %33 = arith.index_cast %arg1 : i32 to index
      %c0_14 = arith.constant 0 : index
      %c0_15 = arith.constant 0 : index
      %34 = vector.load %arg12[%33, %c0_14, %c0_15] : memref<2x8x16xf32, #tpu.memory_space<vmem>>, vector<1x8x16xf32>
      %35 = vector.shape_cast %34 : vector<1x8x16xf32> to vector<8x16xf32>
      %36 = vector.broadcast %29 : vector<8x1xf32> to vector<8x16xf32>
      %37 = arith.mulf %35, %36 : vector<8x16xf32>
      %38 = vector.broadcast %32 : vector<8x1xf32> to vector<8x16xf32>
      %39 = arith.addf %37, %38 : vector<8x16xf32>
      %cst_16 = arith.constant 0.000000e+00 : f32
      %40 = vector.broadcast %cst_16 : f32 to vector<8x16xf32>
      %41 = arith.maximumf %39, %40 : vector<8x16xf32>
      %42 = arith.truncf %41 : vector<8x16xf32> to vector<8x16xbf16>
      %c0_17 = arith.constant 0 : index
      %c2 = arith.constant 2 : index
      %43 = vector.load %arg11[%c0_17, %c2] : memref<8x20xbf16, #tpu.memory_space<vmem>>, vector<8x16xbf16>
      tpu.vector_store %arg11[%c0_17, %c2], %42 {strides = array<i32>} : memref<8x20xbf16, #tpu.memory_space<vmem>>, vector<8x16xbf16>,
      %cst_18 = arith.constant 0.000000e+00 : f32
      %44 = vector.broadcast %cst_18 : f32 to vector<8x16xf32>
      %c0_19 = arith.constant 0 : index
      %c0_20 = arith.constant 0 : index
      %c0_21 = arith.constant 0 : index
      %45 = vector.load %arg6[%c0_19, %c0_20, %c0_21] : memref<5x8x8xbf16, #tpu.memory_space<vmem>>, vector<1x8x8xbf16>
      %46 = vector.shape_cast %45 : vector<1x8x8xbf16> to vector<8x8xbf16>
      %c0_22 = arith.constant 0 : index
      %c0_23 = arith.constant 0 : index
      %47 = vector.load %arg11[%c0_22, %c0_23] : memref<8x20xbf16, #tpu.memory_space<vmem>>, vector<8x16xbf16>
      %cst_24 = arith.constant dense<0.000000e+00> : vector<8x16xf32>
      %48 = tpu.matmul %46, %47, %cst_24 {dimension_numbers = #tpu.dot_dimension_numbers<[1], [0], [0], [1], [0, 0, 1, 1], [], []>} : vector<8x8xbf16>, vector<8x16xbf16>, vector<8x16xf32> -> vector<8x16xf32>
      %49 = arith.addf %44, %48 : vector<8x16xf32>
      %c1 = arith.constant 1 : index
      %c0_25 = arith.constant 0 : index
      %c0_26 = arith.constant 0 : index
      %50 = vector.load %arg6[%c1, %c0_25, %c0_26] : memref<5x8x8xbf16, #tpu.memory_space<vmem>>, vector<1x8x8xbf16>
      %51 = vector.shape_cast %50 : vector<1x8x8xbf16> to vector<8x8xbf16>
      %c0_27 = arith.constant 0 : index
      %c1_28 = arith.constant 1 : index
      %52 = vector.load %arg11[%c0_27, %c1_28] : memref<8x20xbf16, #tpu.memory_space<vmem>>, vector<8x16xbf16>
      %cst_29 = arith.constant dense<0.000000e+00> : vector<8x16xf32>
      %53 = tpu.matmul %51, %52, %cst_29 {dimension_numbers = #tpu.dot_dimension_numbers<[1], [0], [0], [1], [0, 0, 1, 1], [], []>} : vector<8x8xbf16>, vector<8x16xbf16>, vector<8x16xf32> -> vector<8x16xf32>
      %54 = arith.addf %49, %53 : vector<8x16xf32>
      %c2_30 = arith.constant 2 : index
      %c0_31 = arith.constant 0 : index
      %c0_32 = arith.constant 0 : index
      %55 = vector.load %arg6[%c2_30, %c0_31, %c0_32] : memref<5x8x8xbf16, #tpu.memory_space<vmem>>, vector<1x8x8xbf16>
      %56 = vector.shape_cast %55 : vector<1x8x8xbf16> to vector<8x8xbf16>
      %c0_33 = arith.constant 0 : index
      %c2_34 = arith.constant 2 : index
      %57 = vector.load %arg11[%c0_33, %c2_34] : memref<8x20xbf16, #tpu.memory_space<vmem>>, vector<8x16xbf16>
      %cst_35 = arith.constant dense<0.000000e+00> : vector<8x16xf32>
      %58 = tpu.matmul %56, %57, %cst_35 {dimension_numbers = #tpu.dot_dimension_numbers<[1], [0], [0], [1], [0, 0, 1, 1], [], []>} : vector<8x8xbf16>, vector<8x16xbf16>, vector<8x16xf32> -> vector<8x16xf32>
      %59 = arith.addf %54, %58 : vector<8x16xf32>
      %c3 = arith.constant 3 : index
      %c0_36 = arith.constant 0 : index
      %c0_37 = arith.constant 0 : index
      %60 = vector.load %arg6[%c3, %c0_36, %c0_37] : memref<5x8x8xbf16, #tpu.memory_space<vmem>>, vector<1x8x8xbf16>
      %61 = vector.shape_cast %60 : vector<1x8x8xbf16> to vector<8x8xbf16>
      %c0_38 = arith.constant 0 : index
      %c3_39 = arith.constant 3 : index
      %62 = vector.load %arg11[%c0_38, %c3_39] : memref<8x20xbf16, #tpu.memory_space<vmem>>, vector<8x16xbf16>
      %cst_40 = arith.constant dense<0.000000e+00> : vector<8x16xf32>
      %63 = tpu.matmul %61, %62, %cst_40 {dimension_numbers = #tpu.dot_dimension_numbers<[1], [0], [0], [1], [0, 0, 1, 1], [], []>} : vector<8x8xbf16>, vector<8x16xbf16>, vector<8x16xf32> -> vector<8x16xf32>
      %64 = arith.addf %59, %63 : vector<8x16xf32>
      %c4 = arith.constant 4 : index
      %c0_41 = arith.constant 0 : index
      %c0_42 = arith.constant 0 : index
      %65 = vector.load %arg6[%c4, %c0_41, %c0_42] : memref<5x8x8xbf16, #tpu.memory_space<vmem>>, vector<1x8x8xbf16>
      %66 = vector.shape_cast %65 : vector<1x8x8xbf16> to vector<8x8xbf16>
      %c0_43 = arith.constant 0 : index
      %c4_44 = arith.constant 4 : index
      %67 = vector.load %arg11[%c0_43, %c4_44] : memref<8x20xbf16, #tpu.memory_space<vmem>>, vector<8x16xbf16>
      %cst_45 = arith.constant dense<0.000000e+00> : vector<8x16xf32>
      %68 = tpu.matmul %66, %67, %cst_45 {dimension_numbers = #tpu.dot_dimension_numbers<[1], [0], [0], [1], [0, 0, 1, 1], [], []>} : vector<8x8xbf16>, vector<8x16xbf16>, vector<8x16xf32> -> vector<8x16xf32>
      %69 = arith.addf %64, %68 : vector<8x16xf32>
      %70 = arith.index_cast %arg1 : i32 to index
      %c0_46 = arith.constant 0 : index
      %c0_47 = arith.constant 0 : index
      %71 = vector.load %arg13[%70, %c0_46, %c0_47] : memref<2x8x16xf32, #tpu.memory_space<vmem>>, vector<1x8x16xf32>
      %72 = vector.shape_cast %71 : vector<1x8x16xf32> to vector<8x16xf32>
      %73 = vector.shape_cast %69 : vector<8x16xf32> to vector<1x8x16xf32>
      tpu.vector_store %arg13[%70, %c0_46, %c0_47], %73 {strides = array<i32>} : memref<2x8x16xf32, #tpu.memory_space<vmem>>, vector<1x8x16xf32>,
      %c0_48 = arith.constant 0 : index
      %c0_49 = arith.constant 0 : index
      %74 = vector.load %arg15[%c0_48, %c0_49] : memref<16x1xf32, #tpu.memory_space<vmem>>, vector<16x1xf32>
      %75 = arith.mulf %69, %69 : vector<8x16xf32>
      %76 = tpu.concatenate %69, %75 in 0 : vector<8x16xf32>, vector<8x16xf32> -> vector<16x16xf32>
      %cst_50 = arith.constant dense<0.000000e+00> : vector<16xf32>
      %77 = vector.multi_reduction <add>, %76, %cst_50 [1] : vector<16x16xf32> to vector<16xf32>
      %78 = vector.shape_cast %77 : vector<16xf32> to vector<16x1xf32>
      %79 = arith.addf %74, %78 : vector<16x1xf32>
      %c0_51 = arith.constant 0 : index
      %c0_52 = arith.constant 0 : index
      %80 = vector.load %arg15[%c0_51, %c0_52] : memref<16x1xf32, #tpu.memory_space<vmem>>, vector<16x1xf32>
      tpu.vector_store %arg15[%c0_51, %c0_52], %79 {strides = array<i32>} : memref<16x1xf32, #tpu.memory_space<vmem>>, vector<16x1xf32>,
    } else {
    }
    %c2_i32 = arith.constant 2 : i32
    %11 = arith.cmpi eq, %arg0, %c2_i32 : i32
    %12 = arith.extui %11 : i1 to i32
    %c0_i32_5 = arith.constant 0 : i32
    %13 = arith.cmpi ne, %12, %c0_i32_5 : i32
    scf.if %13 {
      %c0 = arith.constant 0 : index
      %c0_6 = arith.constant 0 : index
      %14 = vector.load %arg15[%c0, %c0_6] : memref<16x1xf32, #tpu.memory_space<vmem>>, vector<16x1xf32>
      %15 = vector.extract_strided_slice %14 {offsets = [0, 0], sizes = [8, 1], strides = [1, 1]} : vector<16x1xf32> to vector<8x1xf32>
      %cst = arith.constant 3.125000e-02 : f32
      %16 = vector.broadcast %cst : f32 to vector<8x1xf32>
      %17 = arith.mulf %15, %16 : vector<8x1xf32>
      %18 = vector.extract_strided_slice %14 {offsets = [8, 0], sizes = [8, 1], strides = [1, 1]} : vector<16x1xf32> to vector<8x1xf32>
      %cst_7 = arith.constant 3.125000e-02 : f32
      %19 = vector.broadcast %cst_7 : f32 to vector<8x1xf32>
      %20 = arith.mulf %18, %19 : vector<8x1xf32>
      %21 = arith.mulf %17, %17 : vector<8x1xf32>
      %22 = arith.subf %20, %21 : vector<8x1xf32>
      %cst_8 = arith.constant 0.000000e+00 : f32
      %23 = vector.broadcast %cst_8 : f32 to vector<8x1xf32>
      %24 = arith.maximumf %22, %23 : vector<8x1xf32>
      %c0_9 = arith.constant 0 : index
      %c0_10 = arith.constant 0 : index
      %25 = vector.load %arg7[%c0_9, %c0_10] : memref<8x1xf32, #tpu.memory_space<vmem>>, vector<8x1xf32>
      %cst_11 = arith.constant 9.99999974E-6 : f32
      %26 = vector.broadcast %cst_11 : f32 to vector<8x1xf32>
      %27 = arith.addf %24, %26 : vector<8x1xf32>
      %28 = math.rsqrt %27 : vector<8x1xf32>
      %29 = arith.mulf %25, %28 : vector<8x1xf32>
      %c0_12 = arith.constant 0 : index
      %c0_13 = arith.constant 0 : index
      %30 = vector.load %arg8[%c0_12, %c0_13] : memref<8x1xf32, #tpu.memory_space<vmem>>, vector<8x1xf32>
      %31 = arith.mulf %17, %29 : vector<8x1xf32>
      %32 = arith.subf %30, %31 : vector<8x1xf32>
      %33 = arith.index_cast %arg1 : i32 to index
      %c0_14 = arith.constant 0 : index
      %c0_15 = arith.constant 0 : index
      %34 = vector.load %arg13[%33, %c0_14, %c0_15] : memref<2x8x16xf32, #tpu.memory_space<vmem>>, vector<1x8x16xf32>
      %35 = vector.shape_cast %34 : vector<1x8x16xf32> to vector<8x16xf32>
      %36 = vector.broadcast %29 : vector<8x1xf32> to vector<8x16xf32>
      %37 = arith.mulf %35, %36 : vector<8x16xf32>
      %38 = vector.broadcast %32 : vector<8x1xf32> to vector<8x16xf32>
      %39 = arith.addf %37, %38 : vector<8x16xf32>
      %cst_16 = arith.constant 0.000000e+00 : f32
      %40 = vector.broadcast %cst_16 : f32 to vector<8x16xf32>
      %41 = arith.maximumf %39, %40 : vector<8x16xf32>
      %c0_17 = arith.constant 0 : index
      %c0_18 = arith.constant 0 : index
      %c0_19 = arith.constant 0 : index
      %42 = vector.load %arg9[%c0_17, %c0_18, %c0_19] : memref<1x8x16xf32, #tpu.memory_space<vmem>>, vector<1x8x16xf32>
      %43 = vector.shape_cast %42 : vector<1x8x16xf32> to vector<8x16xf32>
      %44 = vector.shape_cast %41 : vector<8x16xf32> to vector<1x8x16xf32>
      tpu.vector_store %arg9[%c0_17, %c0_18, %c0_19], %44 {strides = array<i32>} : memref<1x8x16xf32, #tpu.memory_space<vmem>>, vector<1x8x16xf32>,
    } else {
    }
    return
  }
  func.func @transform_0(%arg0: i32, %arg1: i32) -> (i32, i32, i32) {
    %c0_i32 = arith.constant 0 : i32
    %0 = arith.cmpi eq, %arg0, %c0_i32 : i32
    %c0_i32_0 = arith.constant 0 : i32
    %1 = arith.select %0, %arg1, %c0_i32_0 : i32
    %c0_i32_1 = arith.constant 0 : i32
    %c0_i32_2 = arith.constant 0 : i32
    %c0_i32_3 = arith.constant 0 : i32
    return %1, %c0_i32_1, %c0_i32_2 : i32, i32, i32
  }
  func.func @transform_1(%arg0: i32, %arg1: i32) -> (i32, i32, i32) {
    %c0_i32 = arith.constant 0 : i32
    %c0_i32_0 = arith.constant 0 : i32
    %c0_i32_1 = arith.constant 0 : i32
    %c0_i32_2 = arith.constant 0 : i32
    return %c0_i32, %c0_i32_0, %c0_i32_1 : i32, i32, i32
  }
  func.func @transform_2(%arg0: i32, %arg1: i32) -> (i32, i32) {
    %c0_i32 = arith.constant 0 : i32
    %c0_i32_0 = arith.constant 0 : i32
    %c0_i32_1 = arith.constant 0 : i32
    return %c0_i32, %c0_i32_0 : i32, i32
  }
  func.func @transform_3(%arg0: i32, %arg1: i32) -> (i32, i32) {
    %c0_i32 = arith.constant 0 : i32
    %c0_i32_0 = arith.constant 0 : i32
    %c0_i32_1 = arith.constant 0 : i32
    return %c0_i32, %c0_i32_0 : i32, i32
  }
  func.func @transform_4(%arg0: i32, %arg1: i32) -> (i32, i32, i32) {
    %c0_i32 = arith.constant 0 : i32
    %c0_i32_0 = arith.constant 0 : i32
    %c0_i32_1 = arith.constant 0 : i32
    %c0_i32_2 = arith.constant 0 : i32
    return %c0_i32, %c0_i32_0, %c0_i32_1 : i32, i32, i32
  }
  func.func @transform_5(%arg0: i32, %arg1: i32) -> (i32, i32) {
    %c0_i32 = arith.constant 0 : i32
    %c0_i32_0 = arith.constant 0 : i32
    %c0_i32_1 = arith.constant 0 : i32
    return %c0_i32, %c0_i32_0 : i32, i32
  }
  func.func @transform_6(%arg0: i32, %arg1: i32) -> (i32, i32) {
    %c0_i32 = arith.constant 0 : i32
    %c0_i32_0 = arith.constant 0 : i32
    %c0_i32_1 = arith.constant 0 : i32
    return %c0_i32, %c0_i32_0 : i32, i32
  }
  func.func @transform_7(%arg0: i32, %arg1: i32) -> (i32, i32, i32) {
    %c2_i32 = arith.constant 2 : i32
    %0 = arith.cmpi eq, %arg0, %c2_i32 : i32
    %c0_i32 = arith.constant 0 : i32
    %1 = arith.select %0, %arg1, %c0_i32 : i32
    %c0_i32_0 = arith.constant 0 : i32
    %c0_i32_1 = arith.constant 0 : i32
    %c0_i32_2 = arith.constant 0 : i32
    return %1, %c0_i32_0, %c0_i32_1 : i32, i32, i32
  }
}

</mosaic_0001>

<llo_original>
// kernel: double_conv.1
$region0: #{double_conv.1}
  #allocation0 [shape = 'u32[]', space=smem, size = 0x4, offset = 0x4, fixed_abs, tag = 'smem constant byte address 0x4 - core index']
  #allocation1 [shape = 'u32[144,128]{1,0:T(1,128)}', space=vmem, size = 0x12000, scoped, tag = 'internal scratch']
  #allocation2 [shape = 'bf16[4,20]{1,0:T(4,128)(2,1)}', space=vmem, size = 0x400, scoped, tag = 'scratch operand']
  #allocation3 [shape = 'bf16[8,20]{1,0:T(8,128)(2,1)}', space=vmem, size = 0x800, scoped, tag = 'scratch operand']
  #allocation4 [shape = 'f32[2,8,16]{2,1,0:T(8,128)}', space=vmem, size = 0x2000, scoped, tag = 'scratch operand']
  #allocation5 [shape = 'f32[2,8,16]{2,1,0:T(8,128)}', space=vmem, size = 0x2000, scoped, tag = 'scratch operand']
  #allocation6 [shape = 'f32[16,1]{1,0:T(8,128)}', space=vmem, size = 0x2000, scoped, tag = 'scratch operand']
  #allocation7 [shape = 'f32[16,1]{1,0:T(8,128)}', space=vmem, size = 0x2000, scoped, tag = 'scratch operand']
  %s0 = inlined_call_operand.vmem [shape: f32[2,4,16], index: 0, kind: input, shape index: {}]
  %s1 = inlined_call_operand.vmem [shape: bf16[5,8,4], index: 1, kind: input, shape index: {}]
  %s2 = inlined_call_operand.vmem [shape: f32[8,1], index: 2, kind: input, shape index: {}]
  %s3 = inlined_call_operand.vmem [shape: f32[8,1], index: 3, kind: input, shape index: {}]
  %s4 = inlined_call_operand.vmem [shape: bf16[5,8,8], index: 4, kind: input, shape index: {}]
  %s5 = inlined_call_operand.vmem [shape: f32[8,1], index: 5, kind: input, shape index: {}]
  %s6 = inlined_call_operand.vmem [shape: f32[8,1], index: 6, kind: input, shape index: {}]
  %s7 = inlined_call_operand.hbm [shape: f32[2,8,16], index: 7, kind: output, shape index: {}]
  %s8 = sld [smem:[#allocation0]]
  $region77: #{double_conv.1} parent=0
    _
  %s10 = ssub.s32 1, %s8
  %s11 = scalar_select 0, %s10, %s8
  $region1: #{double_conv.1} parent=0
    #allocation8 [shape = 'u8[8192]{0}', space=vmem, size = 0x2000, scoped, tag = 'output window, operand 0']
    #allocation9 [shape = 's32[2]{0}', space=sflag, size = 0x8, scoped, tag = 'scoped memory for double_conv.1']
    %12 = vsyncpa [#allocation9], 0
    %s13 = scalar_lea.sflag [#allocation9], 1
    %14 = vsyncpa %s13, 0
    loop: start=0, step=1, limit=8
    $region2: #{double_conv.1} parent=1 // loop_pre_header
      _
    $region3: #{double_conv.1} parent=1 // loop_header
      %s16 = sphi 0, %s20
      %p17 = scmp.ge.s32.totalorder %s16, 8
      %s23 = sphi 0, %s35
      %s24 = sphi 0, %s31
      %s25 = sphi 0, %s23
      %s26 = sphi 0, %s24
      %s27 = sphi 0, %s25
      %s28 = sphi 0, %s26
      %s42 = sphi 0, %s44
      %s45 = sphi 0, %s42
      %s46 = sphi 0, %s45
      %s62 = sphi 0, %s46
      %s66 = sphi 0, %s66
      %s68 = sphi 0, %s66
      %s69 = sphi 0, %s68
      %s83 = sphi 0, %s69
      %s87 = sphi 0, %s87
      %s89 = sphi 0, %s87
      %s90 = sphi 0, %s89
      %s104 = sphi 0, %s90
      %s108 = sphi 0, %s108
      %s110 = sphi 0, %s108
      %s111 = sphi 0, %s110
      %s125 = sphi 0, %s111
      %s129 = sphi 0, %s129
      %s131 = sphi 0, %s129
      %s132 = sphi 0, %s131
      %s146 = sphi 0, %s132
      %s150 = sphi 0, %s150
      %s152 = sphi 0, %s150
      %s153 = sphi 0, %s152
      %s167 = sphi 0, %s153
      %s171 = sphi 0, %s171
      %s173 = sphi 0, %s171
      %s174 = sphi 0, %s173
      %s188 = sphi 0, %s174
      %s198 = sphi 0, %s200
      %s201 = sphi 0, %s198
      %s202 = sphi 0, %s201
      %s218 = sphi 0, %s202
    $region4: #{double_conv.1} parent=1 // loop_header_branch
      %19 = sbr.rel (%p17) target = $region8
    $region5: #{double_conv.1} parent=1 // loop_body
      %s21 = ssub.s32 %s16, 1
      %s22 = ssub.s32 %s16, 2
      %s29 = sadd.s32 1, %s24
      %p30 = scmp.ge.s32.totalorder %s29, 2
      %s31 = scalar_select %p30, 0, %s29
      %s32 = sadd.s32 1, %s23
      %s33 = scalar_select %p30, %s32, %s23
      %p34 = scmp.ge.s32.totalorder %s33, 3
      %s35 = scalar_select %p34, 0, %s33
      %p36 = scmp.eq.s32.totalorder %s23, 0
      %s37 = scalar_select %p36, %s24, 0
      %p38 = scmp.eq.s32.totalorder %s35, 0
      %s39 = scalar_select %p38, %s31, 0
      %s40 = ssub.s32 %s37, %s39
      %p41 = scmp.eq.s32.totalorder %s40, 0
      %s43 = sadd.s32 %s42, 1
      %s44 = scalar_select %p41, %s42, %s43
      %p47 = pneg %p41
      %p48 = scmp.eq.s32.totalorder %s16, 5
      %p49 = por %p47, %p48
      %p50 = scmp.ne.s32.totalorder %s42, %s45
      %p51 = scmp.eq.s32.totalorder %s16, 0
      %p52 = por %p50, %p51
      %p53 = scmp.ne.s32.totalorder %s42, %s45
      %p54 = scmp.eq.s32.totalorder %s21, 5
      %p55 = por %p53, %p54
      %p56 = scmp.ne.s32.totalorder %s45, %s46
      %p57 = scmp.eq.s32.totalorder %s21, 0
      %p58 = por %p56, %p57
      %p59 = scmp.ne.s32.totalorder %s45, %s46
      %p60 = scmp.eq.s32.totalorder %s22, 5
      %p61 = por %p59, %p60
      %p63 = scmp.ne.s32.totalorder %s46, %s62
      %p64 = scmp.eq.s32.totalorder %s22, 0
      %p65 = por %p63, %p64
      %s67 = sadd.s32 %s66, 1
      %p70 = scmp.eq.s32.totalorder %s16, 5
      %p71 = scmp.ne.s32.totalorder %s66, %s68
      %p72 = scmp.eq.s32.totalorder %s16, 0
      %p73 = por %p71, %p72
      %p74 = scmp.ne.s32.totalorder %s66, %s68
      %p75 = scmp.eq.s32.totalorder %s21, 5
      %p76 = por %p74, %p75
      %p77 = scmp.ne.s32.totalorder %s68, %s69
      %p78 = scmp.eq.s32.totalorder %s21, 0
      %p79 = por %p77, %p78
      %p80 = scmp.ne.s32.totalorder %s68, %s69
      %p81 = scmp.eq.s32.totalorder %s22, 5
      %p82 = por %p80, %p81
      %p84 = scmp.ne.s32.totalorder %s69, %s83
      %p85 = scmp.eq.s32.totalorder %s22, 0
      %p86 = por %p84, %p85
      %s88 = sadd.s32 %s87, 1
      %p91 = scmp.eq.s32.totalorder %s16, 5
      %p92 = scmp.ne.s32.totalorder %s87, %s89
      %p93 = scmp.eq.s32.totalorder %s16, 0
      %p94 = por %p92, %p93
      %p95 = scmp.ne.s32.totalorder %s87, %s89
      %p96 = scmp.eq.s32.totalorder %s21, 5
      %p97 = por %p95, %p96
      %p98 = scmp.ne.s32.totalorder %s89, %s90
      %p99 = scmp.eq.s32.totalorder %s21, 0
      %p100 = por %p98, %p99
      %p101 = scmp.ne.s32.totalorder %s89, %s90
      %p102 = scmp.eq.s32.totalorder %s22, 5
      %p103 = por %p101, %p102
      %p105 = scmp.ne.s32.totalorder %s90, %s104
      %p106 = scmp.eq.s32.totalorder %s22, 0
      %p107 = por %p105, %p106
      %s109 = sadd.s32 %s108, 1
      %p112 = scmp.eq.s32.totalorder %s16, 5
      %p113 = scmp.ne.s32.totalorder %s108, %s110
      %p114 = scmp.eq.s32.totalorder %s16, 0
      %p115 = por %p113, %p114
      %p116 = scmp.ne.s32.totalorder %s108, %s110
      %p117 = scmp.eq.s32.totalorder %s21, 5
      %p118 = por %p116, %p117
      %p119 = scmp.ne.s32.totalorder %s110, %s111
      %p120 = scmp.eq.s32.totalorder %s21, 0
      %p121 = por %p119, %p120
      %p122 = scmp.ne.s32.totalorder %s110, %s111
      %p123 = scmp.eq.s32.totalorder %s22, 5
      %p124 = por %p122, %p123
      %p126 = scmp.ne.s32.totalorder %s111, %s125
      %p127 = scmp.eq.s32.totalorder %s22, 0
      %p128 = por %p126, %p127
      %s130 = sadd.s32 %s129, 1
      %p133 = scmp.eq.s32.totalorder %s16, 5
      %p134 = scmp.ne.s32.totalorder %s129, %s131
      %p135 = scmp.eq.s32.totalorder %s16, 0
      %p136 = por %p134, %p135
      %p137 = scmp.ne.s32.totalorder %s129, %s131
      %p138 = scmp.eq.s32.totalorder %s21, 5
      %p139 = por %p137, %p138
      %p140 = scmp.ne.s32.totalorder %s131, %s132
      %p141 = scmp.eq.s32.totalorder %s21, 0
      %p142 = por %p140, %p141
      %p143 = scmp.ne.s32.totalorder %s131, %s132
      %p144 = scmp.eq.s32.totalorder %s22, 5
      %p145 = por %p143, %p144
      %p147 = scmp.ne.s32.totalorder %s132, %s146
      %p148 = scmp.eq.s32.totalorder %s22, 0
      %p149 = por %p147, %p148
      %s151 = sadd.s32 %s150, 1
      %p154 = scmp.eq.s32.totalorder %s16, 5
      %p155 = scmp.ne.s32.totalorder %s150, %s152
      %p156 = scmp.eq.s32.totalorder %s16, 0
      %p157 = por %p155, %p156
      %p158 = scmp.ne.s32.totalorder %s150, %s152
      %p159 = scmp.eq.s32.totalorder %s21, 5
      %p160 = por %p158, %p159
      %p161 = scmp.ne.s32.totalorder %s152, %s153
      %p162 = scmp.eq.s32.totalorder %s21, 0
      %p163 = por %p161, %p162
      %p164 = scmp.ne.s32.totalorder %s152, %s153
      %p165 = scmp.eq.s32.totalorder %s22, 5
      %p166 = por %p164, %p165
      %p168 = scmp.ne.s32.totalorder %s153, %s167
      %p169 = scmp.eq.s32.totalorder %s22, 0
      %p170 = por %p168, %p169
      %s172 = sadd.s32 %s171, 1
      %p175 = scmp.eq.s32.totalorder %s16, 5
      %p176 = scmp.ne.s32.totalorder %s171, %s173
      %p177 = scmp.eq.s32.totalorder %s16, 0
      %p178 = por %p176, %p177
      %p179 = scmp.ne.s32.totalorder %s171, %s173
      %p180 = scmp.eq.s32.totalorder %s21, 5
      %p181 = por %p179, %p180
      %p182 = scmp.ne.s32.totalorder %s173, %s174
      %p183 = scmp.eq.s32.totalorder %s21, 0
      %p184 = por %p182, %p183
      %p185 = scmp.ne.s32.totalorder %s173, %s174
      %p186 = scmp.eq.s32.totalorder %s22, 5
      %p187 = por %p185, %p186
      %p189 = scmp.ne.s32.totalorder %s174, %s188
      %p190 = scmp.eq.s32.totalorder %s22, 0
      %p191 = por %p189, %p190
      %p192 = scmp.eq.s32.totalorder %s23, 2
      %s193 = scalar_select %p192, %s24, 0
      %p194 = scmp.eq.s32.totalorder %s35, 2
      %s195 = scalar_select %p194, %s31, 0
      %s196 = ssub.s32 %s193, %s195
      %p197 = scmp.eq.s32.totalorder %s196, 0
      %s199 = sadd.s32 %s198, 1
      %s200 = scalar_select %p197, %s198, %s199
      %p203 = pneg %p197
      %p204 = scmp.eq.s32.totalorder %s16, 5
      %p205 = por %p203, %p204
      %p206 = scmp.ne.s32.totalorder %s198, %s201
      %p207 = scmp.eq.s32.totalorder %s16, 0
      %p208 = por %p206, %p207
      %p209 = scmp.ne.s32.totalorder %s198, %s201
      %p210 = scmp.eq.s32.totalorder %s21, 5
      %p211 = por %p209, %p210
      %p212 = scmp.ne.s32.totalorder %s201, %s202
      %p213 = scmp.eq.s32.totalorder %s21, 0
      %p214 = por %p212, %p213
      %p215 = scmp.ne.s32.totalorder %s201, %s202
      %p216 = scmp.eq.s32.totalorder %s22, 5
      %p217 = por %p215, %p216
      %p219 = scmp.ne.s32.totalorder %s202, %s218
      %p220 = scmp.eq.s32.totalorder %s22, 0
      %p221 = por %p219, %p220
      %p222 = scmp.le.s32.totalorder 1, %s16
      %p223 = scmp.lt.s32.totalorder %s16, 7
      %p224 = pnand %p222, %p223
      %p225 = pneg %p224
      // Predicated region
      $region9: #{double_conv.1} parent=5 // pred_check
        _
      $region10: #{double_conv.1} parent=5 // pred_check_branch
        %227 = sbr.rel (%p224) target = $region12
      $region11: #{double_conv.1} parent=5 // pred_region
        %s228 = ssub.s32 %s16, 1
        // Predicated region
        $region13: #{double_conv.1} parent=11 // pred_check
          %p229 = pneg %p79
        $region14: #{double_conv.1} parent=11 // pred_check_branch
          %231 = sbr.rel (%p229) target = $region16
        $region15: #{double_conv.1} parent=11 // pred_region
          _
        $region16: #{double_conv.1} parent=11 // pred_fallthru
          _
        // Predicated region
        $region17: #{double_conv.1} parent=11 // pred_check
          %p232 = pneg %p100
        $region18: #{double_conv.1} parent=11 // pred_check_branch
          %234 = sbr.rel (%p232) target = $region20
        $region19: #{double_conv.1} parent=11 // pred_region
          _
        $region20: #{double_conv.1} parent=11 // pred_fallthru
          _
        // Predicated region
        $region21: #{double_conv.1} parent=11 // pred_check
          %p235 = pneg %p121
        $region22: #{double_conv.1} parent=11 // pred_check_branch
          %237 = sbr.rel (%p235) target = $region24
        $region23: #{double_conv.1} parent=11 // pred_region
          _
        $region24: #{double_conv.1} parent=11 // pred_fallthru
          _
        // Predicated region
        $region25: #{double_conv.1} parent=11 // pred_check
          %p238 = pneg %p142
        $region26: #{double_conv.1} parent=11 // pred_check_branch
          %240 = sbr.rel (%p238) target = $region28
        $region27: #{double_conv.1} parent=11 // pred_region
          _
        $region28: #{double_conv.1} parent=11 // pred_fallthru
          _
        // Predicated region
        $region29: #{double_conv.1} parent=11 // pred_check
          %p241 = pneg %p163
        $region30: #{double_conv.1} parent=11 // pred_check_branch
          %243 = sbr.rel (%p241) target = $region32
        $region31: #{double_conv.1} parent=11 // pred_region
          _
        $region32: #{double_conv.1} parent=11 // pred_fallthru
          _
        // Predicated region
        $region33: #{double_conv.1} parent=11 // pred_check
          %p244 = pneg %p184
        $region34: #{double_conv.1} parent=11 // pred_check_branch
          %246 = sbr.rel (%p244) target = $region36
        $region35: #{double_conv.1} parent=11 // pred_region
          _
        $region36: #{double_conv.1} parent=11 // pred_fallthru
          _
      $region12: #{double_conv.1} parent=5 // pred_fallthru
        _
      %p247 = scmp.lt.s32.totalorder %s16, 6
      // Predicated region
      $region37: #{double_conv.1} parent=5 // pred_check
        %p248 = pneg %p247
      $region38: #{double_conv.1} parent=5 // pred_check_branch
        %250 = sbr.rel (%p248) target = $region40
      $region39: #{double_conv.1} parent=5 // pred_region
        // Predicated region
        $region41: #{double_conv.1} parent=39 // pred_check
          %p251 = pneg %p52
        $region42: #{double_conv.1} parent=39 // pred_check_branch
          %253 = sbr.rel (%p251) target = $region44
        $region43: #{double_conv.1} parent=39 // pred_region
          %p254 = scmp.eq.s32.totalorder %s23, 0
          %s255 = scalar_select %p254, %s24, 0
          %p256 = scmp.lt.s32.totalorder %s255, 1
          %s257 = scalar_select %p256, %s255, 1
          %s258 = smul.addr %s257, 4
          %s259 = scalar_lea.vmem %s0, %s258
          %p260 = scmp.eq.s32.totalorder %s23, 0
          %s261 = scalar_select %p260, %s24, 0
        $region44: #{double_conv.1} parent=39 // pred_fallthru
          _
      $region40: #{double_conv.1} parent=5 // pred_fallthru
        _
      %p262 = scmp.le.s32.totalorder 1, %s16
      %p263 = scmp.lt.s32.totalorder %s16, 7
      %p264 = pnand %p262, %p263
      %p265 = pneg %p264
      // Predicated region
      $region45: #{double_conv.1} parent=5 // pred_check
        _
      $region46: #{double_conv.1} parent=5 // pred_check_branch
        %267 = sbr.rel (%p264) target = $region48
      $region47: #{double_conv.1} parent=5 // pred_region
        %s268 = ssub.s32 %s16, 1
        %p269 = scmp.eq.s32.totalorder %s25, 0
        %s270 = scalar_select %p269, %s26, 0
        %p271 = scmp.lt.s32.totalorder %s270, 1
        %s272 = scalar_select %p271, %s270, 1
        %s273 = smul.addr %s272, 4
        %s274 = scalar_lea.vmem %s0, %s273
        %p275 = pneg %p58
        %p276 = pneg %p55
        %p277 = pneg %p79
        %p278 = pneg %p76
        %p279 = pneg %p100
        %p280 = pneg %p97
        %p281 = pneg %p121
        %p282 = pneg %p118
        %p283 = pneg %p142
        %p284 = pneg %p139
        %p285 = pneg %p163
        %p286 = pneg %p160
        %p287 = pneg %p184
        %p288 = pneg %p181
        %p289 = pneg %p214
        %p290 = pneg %p211
        %s291 = sand.u32 %s201, 1
        %s292 = scalar_lea.sflag [#allocation9], %s291
        %s293 = sand.u32 %s201, 1
        %s294 = smul.addr %s293, 8
        %s295 = scalar_lea.vmem [#allocation8], %s294
        %p296 = scmp.eq.s32.totalorder %s25, 0
        %s297 = scalar_select %p296, %s26, 0
        %p298 = scmp.lt.s32.totalorder %s297, 1
        %s299 = scalar_select %p298, %s297, 1
        %s300 = smul.addr %s299, 4
        %s301 = scalar_lea.vmem %s0, %s300
        %p302 = scmp.eq.s32.totalorder %s25, 0
        %s303 = scalar_select %p302, %s26, 0
        %p304 = scmp.eq.s32.totalorder %s25, 2
        %s305 = scalar_select %p304, %s26, 0
        %p307 = scmp.eq.s32.totalorder %s25, 0
        %p308 = scmp.eq.s32.totalorder %s26, 0
        %p309 = pnand %p307, %p308
        %p310 = pneg %p309
        // Predicated region
        $region49: #{double_conv.1} parent=47 // pred_check
          _
        $region50: #{double_conv.1} parent=47 // pred_check_branch
          %312 = sbr.rel (%p309) target = $region52
        $region51: #{double_conv.1} parent=47 // pred_region
          %vm313 = vcmask 7168
          %314 = vst.msk [vmem:[#allocation6] sm:$0xff] %vm313, 0.0
          %315 = vst.msk [vmem:[#allocation6 + $0x8] sm:$0xff] %vm313, 0.0
          %316 = vst.msk [vmem:[#allocation7] sm:$0xff] %vm313, 0.0
          %317 = vst.msk [vmem:[#allocation7 + $0x8] sm:$0xff] %vm313, 0.0
          %vm318 = vcmask 9216
          %319 = vst.msk [vmem:[#allocation2] sm:$0x3] %vm318, 0
          %vm320 = vcmask 156816
          %321 = vst.msk [vmem:[#allocation2] sm:$0x3] %vm320, 0
          %vm322 = vcmask 11264
          %323 = vst.msk [vmem:[#allocation3] sm:$0xf] %vm322, 0
          %vm324 = vcmask 158864
          %325 = vst.msk [vmem:[#allocation3] sm:$0xf] %vm324, 0
        $region52: #{double_conv.1} parent=47 // pred_fallthru
          _
        // Predicated region
        $region53: #{double_conv.1} parent=47 // pred_check
          %p326 = pneg %p307
        $region54: #{double_conv.1} parent=47 // pred_check_branch
          %328 = sbr.rel (%p326) target = $region56
        $region55: #{double_conv.1} parent=47 // pred_region
          %v329 = vld [vmem:[%s301] sm:$0xf]
          %v330 = vpack.c.bf16 %v329, %v329
          %v333 = vunpack.c.l.s4 1983009808
          %v334 = vunpack.c.0.s8 %v333
          %v335 = vlaneseq
          %v336 = vshrl.u32 %v335, 7
          %v337 = vsub.s32 %v334, %v336
          %v338 = vrot.slane %v330, %v337
          %339 = vrot.lane.b32.xlu0 %v338, 2
          %v340 = vpop.permute.xlu0 %339
          %vm342 = vcmask 140304
          %343 = vst.msk [vmem:[#allocation2] sm:$0x3] %vm342, %v340
          %v344 = vld [vmem:[%s1] sm:$0xf]
          %v345 = vld [vmem:[#allocation2] sm:$0x3]
          %s346 = scalar_lea.vmem %s1, 4
          %v347 = vld [vmem:[%s346] sm:$0xf]
          %v350 = vunpack.c.l.s4 1983009808
          %v351 = vunpack.c.0.s8 %v350
          %v352 = vlaneseq
          %v353 = vshrl.u32 %v352, 7
          %v354 = vsub.s32 %v351, %v353
          %v355 = vrot.slane %v345, %v354
          %356 = vrot.lane.b32.xlu0 %v355, 127
          %v357 = vpop.permute.xlu0 %356
          %vm358 = vcmask 31744
          %v360 = vsel %vm358, %v347, 0
          %vm362 = vcmask 1041408
          %v364 = vsel %vm362, %v357, 0
          %366 = vmatprep.subr.bf16.mxu0 0
          %367 = vmatpush1.bf16.msra.mxu0 %v364
          %368 = vmatprep.subr.bf16.mxu0 0
          %369 = vmatpush1.bf16.msra.mxu0 0
          %370 = vmatprep.subr.bf16.mxu0 0
          %371 = vmatpush1.bf16.msra.mxu0 0
          %372 = vmatprep.subr.bf16.mxu0 0
          %373 = vmatpush1.bf16.msra.mxu0 0
          %374 = vmatprep.subr.bf16.mxu0 0
          %375 = vmatpush1.bf16.msra.mxu0 0
          %376 = vmatprep.subr.bf16.mxu0 0
          %377 = vmatpush1.bf16.msra.mxu0 0
          %378 = vmatprep.subr.bf16.mxu0 0
          %379 = vmatpush1.bf16.msra.mxu0 0
          %380 = vmatprep.subr.bf16.mxu0 0
          %381 = vmatpush1.bf16.msra.mxu0 0
          %382 = vmatprep.subr.bf16.mxu0 0
          %383 = vmatpush1.bf16.msra.mxu0 0
          %384 = vmatprep.subr.bf16.mxu0 0
          %385 = vmatpush1.bf16.msra.mxu0 0
          %386 = vmatprep.subr.bf16.mxu0 0
          %387 = vmatpush1.bf16.msra.mxu0 0
          %388 = vmatprep.subr.bf16.mxu0 0
          %389 = vmatpush1.bf16.msra.mxu0 0
          %390 = vmatprep.subr.bf16.mxu0 0
          %391 = vmatpush1.bf16.msra.mxu0 0
          %392 = vmatprep.subr.bf16.mxu0 0
          %393 = vmatpush1.bf16.msra.mxu0 0
          %394 = vmatprep.subr.bf16.mxu0 0
          %395 = vmatpush1.bf16.msra.mxu0 0
          %396 = vmatprep.subr.bf16.mxu0 0
          %397 = vmatpush1.bf16.msra.mxu0 0
          %398 = vmatprep.mubr.bf16.mxu0 0
          %399 = vmatmul.mubr.bf16.gmra.mrb[0].mxu0 %v360
          %v400 = vpop.f32.mrb[0].mxu0
          %v401 = vadd.f32 0.0, %v400
          %v402 = vpop.f32.mrb[0].mxu0
          %v403 = vpop.f32.mrb[0].mxu0
          %v404 = vpop.f32.mrb[0].mxu0
          %405 = vdwg.mxu0
          %v407 = vsel %vm358, %v344, 0
          %v410 = vsel %vm362, %v345, 0
          %412 = vmatprep.subr.bf16.mxu0 0
          %413 = vmatpush1.bf16.msra.mxu0 %v410
          %414 = vmatprep.subr.bf16.mxu0 0
          %415 = vmatpush1.bf16.msra.mxu0 0
          %416 = vmatprep.subr.bf16.mxu0 0
          %417 = vmatpush1.bf16.msra.mxu0 0
          %418 = vmatprep.subr.bf16.mxu0 0
          %419 = vmatpush1.bf16.msra.mxu0 0
          %420 = vmatprep.subr.bf16.mxu0 0
          %421 = vmatpush1.bf16.msra.mxu0 0
          %422 = vmatprep.subr.bf16.mxu0 0
          %423 = vmatpush1.bf16.msra.mxu0 0
          %424 = vmatprep.subr.bf16.mxu0 0
          %425 = vmatpush1.bf16.msra.mxu0 0
          %426 = vmatprep.subr.bf16.mxu0 0
          %427 = vmatpush1.bf16.msra.mxu0 0
          %428 = vmatprep.subr.bf16.mxu0 0
          %429 = vmatpush1.bf16.msra.mxu0 0
          %430 = vmatprep.subr.bf16.mxu0 0
          %431 = vmatpush1.bf16.msra.mxu0 0
          %432 = vmatprep.subr.bf16.mxu0 0
          %433 = vmatpush1.bf16.msra.mxu0 0
          %434 = vmatprep.subr.bf16.mxu0 0
          %435 = vmatpush1.bf16.msra.mxu0 0
          %436 = vmatprep.subr.bf16.mxu0 0
          %437 = vmatpush1.bf16.msra.mxu0 0
          %438 = vmatprep.subr.bf16.mxu0 0
          %439 = vmatpush1.bf16.msra.mxu0 0
          %440 = vmatprep.subr.bf16.mxu0 0
          %441 = vmatpush1.bf16.msra.mxu0 0
          %442 = vmatprep.subr.bf16.mxu0 0
          %443 = vmatpush1.bf16.msra.mxu0 0
          %444 = vmatprep.mubr.bf16.mxu0 0
          %445 = vmatmul.mubr.bf16.gmra.mrb[0].mxu0 %v407
          %v446 = vpop.f32.mrb[0].mxu0
          %v447 = vadd.f32 %v401, %v446
          %v448 = vpop.f32.mrb[0].mxu0
          %v449 = vpop.f32.mrb[0].mxu0
          %v450 = vpop.f32.mrb[0].mxu0
          %451 = vdwg.mxu0
          %s452 = scalar_lea.vmem %s1, 8
          %v453 = vld [vmem:[%s452] sm:$0xf]
          %v454 = vld [vmem:[#allocation2] sm:$0x3]
          %v457 = vunpack.c.l.s4 1983009808
          %v458 = vunpack.c.0.s8 %v457
          %v459 = vlaneseq
          %v460 = vshrl.u32 %v459, 7
          %v461 = vsub.s32 %v458, %v460
          %v462 = vrot.slane %v454, %v461
          %463 = vrot.lane.b32.xlu0 %v462, 126
          %v464 = vpop.permute.xlu0 %463
          %v466 = vsel %vm358, %v453, 0
          %v469 = vsel %vm362, %v464, 0
          %471 = vmatprep.subr.bf16.mxu0 0
          %472 = vmatpush1.bf16.msra.mxu0 %v469
          %473 = vmatprep.subr.bf16.mxu0 0
          %474 = vmatpush1.bf16.msra.mxu0 0
          %475 = vmatprep.subr.bf16.mxu0 0
          %476 = vmatpush1.bf16.msra.mxu0 0
          %477 = vmatprep.subr.bf16.mxu0 0
          %478 = vmatpush1.bf16.msra.mxu0 0
          %479 = vmatprep.subr.bf16.mxu0 0
          %480 = vmatpush1.bf16.msra.mxu0 0
          %481 = vmatprep.subr.bf16.mxu0 0
          %482 = vmatpush1.bf16.msra.mxu0 0
          %483 = vmatprep.subr.bf16.mxu0 0
          %484 = vmatpush1.bf16.msra.mxu0 0
          %485 = vmatprep.subr.bf16.mxu0 0
          %486 = vmatpush1.bf16.msra.mxu0 0
          %487 = vmatprep.subr.bf16.mxu0 0
          %488 = vmatpush1.bf16.msra.mxu0 0
          %489 = vmatprep.subr.bf16.mxu0 0
          %490 = vmatpush1.bf16.msra.mxu0 0
          %491 = vmatprep.subr.bf16.mxu0 0
          %492 = vmatpush1.bf16.msra.mxu0 0
          %493 = vmatprep.subr.bf16.mxu0 0
          %494 = vmatpush1.bf16.msra.mxu0 0
          %495 = vmatprep.subr.bf16.mxu0 0
          %496 = vmatpush1.bf16.msra.mxu0 0
          %497 = vmatprep.subr.bf16.mxu0 0
          %498 = vmatpush1.bf16.msra.mxu0 0
          %499 = vmatprep.subr.bf16.mxu0 0
          %500 = vmatpush1.bf16.msra.mxu0 0
          %501 = vmatprep.subr.bf16.mxu0 0
          %502 = vmatpush1.bf16.msra.mxu0 0
          %503 = vmatprep.mubr.bf16.mxu0 0
          %504 = vmatmul.mubr.bf16.gmra.mrb[0].mxu0 %v466
          %v505 = vpop.f32.mrb[0].mxu0
          %v506 = vadd.f32 0.0, %v505
          %v507 = vpop.f32.mrb[0].mxu0
          %v508 = vpop.f32.mrb[0].mxu0
          %v509 = vpop.f32.mrb[0].mxu0
          %510 = vdwg.mxu0
          %v511 = vadd.f32 %v447, %v506
          %s512 = scalar_lea.vmem %s1, 12
          %v513 = vld [vmem:[%s512] sm:$0xf]
          %v514 = vld [vmem:[#allocation2] sm:$0x3]
          %v517 = vunpack.c.l.s4 1983009808
          %v518 = vunpack.c.0.s8 %v517
          %v519 = vlaneseq
          %v520 = vshrl.u32 %v519, 7
          %v521 = vsub.s32 %v518, %v520
          %v522 = vrot.slane %v514, %v521
          %523 = vrot.lane.b32.xlu0 %v522, 125
          %v524 = vpop.permute.xlu0 %523
          %v526 = vsel %vm358, %v513, 0
          %v529 = vsel %vm362, %v524, 0
          %531 = vmatprep.subr.bf16.mxu0 0
          %532 = vmatpush1.bf16.msra.mxu0 %v529
          %533 = vmatprep.subr.bf16.mxu0 0
          %534 = vmatpush1.bf16.msra.mxu0 0
          %535 = vmatprep.subr.bf16.mxu0 0
          %536 = vmatpush1.bf16.msra.mxu0 0
          %537 = vmatprep.subr.bf16.mxu0 0
          %538 = vmatpush1.bf16.msra.mxu0 0
          %539 = vmatprep.subr.bf16.mxu0 0
          %540 = vmatpush1.bf16.msra.mxu0 0
          %541 = vmatprep.subr.bf16.mxu0 0
          %542 = vmatpush1.bf16.msra.mxu0 0
          %543 = vmatprep.subr.bf16.mxu0 0
          %544 = vmatpush1.bf16.msra.mxu0 0
          %545 = vmatprep.subr.bf16.mxu0 0
          %546 = vmatpush1.bf16.msra.mxu0 0
          %547 = vmatprep.subr.bf16.mxu0 0
          %548 = vmatpush1.bf16.msra.mxu0 0
          %549 = vmatprep.subr.bf16.mxu0 0
          %550 = vmatpush1.bf16.msra.mxu0 0
          %551 = vmatprep.subr.bf16.mxu0 0
          %552 = vmatpush1.bf16.msra.mxu0 0
          %553 = vmatprep.subr.bf16.mxu0 0
          %554 = vmatpush1.bf16.msra.mxu0 0
          %555 = vmatprep.subr.bf16.mxu0 0
          %556 = vmatpush1.bf16.msra.mxu0 0
          %557 = vmatprep.subr.bf16.mxu0 0
          %558 = vmatpush1.bf16.msra.mxu0 0
          %559 = vmatprep.subr.bf16.mxu0 0
          %560 = vmatpush1.bf16.msra.mxu0 0
          %561 = vmatprep.subr.bf16.mxu0 0
          %562 = vmatpush1.bf16.msra.mxu0 0
          %563 = vmatprep.mubr.bf16.mxu0 0
          %564 = vmatmul.mubr.bf16.gmra.mrb[0].mxu0 %v526
          %v565 = vpop.f32.mrb[0].mxu0
          %v566 = vadd.f32 0.0, %v565
          %v567 = vpop.f32.mrb[0].mxu0
          %v568 = vpop.f32.mrb[0].mxu0
          %v569 = vpop.f32.mrb[0].mxu0
          %570 = vdwg.mxu0
          %v571 = vadd.f32 %v511, %v566
          %s572 = scalar_lea.vmem %s1, 16
          %v573 = vld [vmem:[%s572] sm:$0xf]
          %v574 = vld [vmem:[#allocation2] sm:$0x3]
          %v577 = vunpack.c.l.s4 1983009808
          %v578 = vunpack.c.0.s8 %v577
          %v579 = vlaneseq
          %v580 = vshrl.u32 %v579, 7
          %v581 = vsub.s32 %v578, %v580
          %v582 = vrot.slane %v574, %v581
          %583 = vrot.lane.b32.xlu0 %v582, 124
          %v584 = vpop.permute.xlu0 %583
          %v586 = vsel %vm358, %v573, 0
          %v589 = vsel %vm362, %v584, 0
          %591 = vmatprep.subr.bf16.mxu0 0
          %592 = vmatpush1.bf16.msra.mxu0 %v589
          %593 = vmatprep.subr.bf16.mxu0 0
          %594 = vmatpush1.bf16.msra.mxu0 0
          %595 = vmatprep.subr.bf16.mxu0 0
          %596 = vmatpush1.bf16.msra.mxu0 0
          %597 = vmatprep.subr.bf16.mxu0 0
          %598 = vmatpush1.bf16.msra.mxu0 0
          %599 = vmatprep.subr.bf16.mxu0 0
          %600 = vmatpush1.bf16.msra.mxu0 0
          %601 = vmatprep.subr.bf16.mxu0 0
          %602 = vmatpush1.bf16.msra.mxu0 0
          %603 = vmatprep.subr.bf16.mxu0 0
          %604 = vmatpush1.bf16.msra.mxu0 0
          %605 = vmatprep.subr.bf16.mxu0 0
          %606 = vmatpush1.bf16.msra.mxu0 0
          %607 = vmatprep.subr.bf16.mxu0 0
          %608 = vmatpush1.bf16.msra.mxu0 0
          %609 = vmatprep.subr.bf16.mxu0 0
          %610 = vmatpush1.bf16.msra.mxu0 0
          %611 = vmatprep.subr.bf16.mxu0 0
          %612 = vmatpush1.bf16.msra.mxu0 0
          %613 = vmatprep.subr.bf16.mxu0 0
          %614 = vmatpush1.bf16.msra.mxu0 0
          %615 = vmatprep.subr.bf16.mxu0 0
          %616 = vmatpush1.bf16.msra.mxu0 0
          %617 = vmatprep.subr.bf16.mxu0 0
          %618 = vmatpush1.bf16.msra.mxu0 0
          %619 = vmatprep.subr.bf16.mxu0 0
          %620 = vmatpush1.bf16.msra.mxu0 0
          %621 = vmatprep.subr.bf16.mxu0 0
          %622 = vmatpush1.bf16.msra.mxu0 0
          %623 = vmatprep.mubr.bf16.mxu0 0
          %624 = vmatmul.mubr.bf16.gmra.mrb[0].mxu0 %v586
          %v625 = vpop.f32.mrb[0].mxu0
          %v626 = vadd.f32 0.0, %v625
          %v627 = vpop.f32.mrb[0].mxu0
          %v628 = vpop.f32.mrb[0].mxu0
          %v629 = vpop.f32.mrb[0].mxu0
          %630 = vdwg.mxu0
          %v631 = vadd.f32 %v571, %v626
          %s632 = smul.u32 %s26, 8
          %s633 = scalar_lea.vmem [#allocation4], %s632
          %vm634 = vcmask 130048
          %635 = vst.msk [vmem:[%s633] sm:$0xff] %vm634, %v631
          %v636 = vld [vmem:[#allocation6] sm:$0xff]
          %v637 = vld [vmem:[#allocation6 + $0x8] sm:$0xff]
          %v638 = vmul.f32 %v631, %v631
          %v639 = vsel %vm634, %v631, 0.0
          %640 = vadd.xlane.f32.xlu0 %v639
          %v641 = vpop.xlane.xlu0 %640
          %v642 = vsel %vm634, %v638, 0.0
          %643 = vadd.xlane.f32.xlu0 %v642
          %v644 = vpop.xlane.xlu0 %643
          %v645 = vadd.f32 %v636, %v641
          %v646 = vadd.f32 %v637, %v644
          %vm647 = vcmask 7168
          %648 = vst.msk [vmem:[#allocation6] sm:$0xff] %vm647, %v645
          %649 = vst.msk [vmem:[#allocation6 + $0x8] sm:$0xff] %vm647, %v646
        $region56: #{double_conv.1} parent=47 // pred_fallthru
          _
        %p650 = scmp.eq.s32.totalorder %s25, 1
        // Predicated region
        $region57: #{double_conv.1} parent=47 // pred_check
          %p651 = pneg %p650
        $region58: #{double_conv.1} parent=47 // pred_check_branch
          %653 = sbr.rel (%p651) target = $region60
        $region59: #{double_conv.1} parent=47 // pred_region
          %v654 = vld [vmem:[#allocation6] sm:$0xff]
          %v655 = vld [vmem:[#allocation6 + $0x8] sm:$0xff]
          %v656 = vmul.f32 %v654, 0.03125
          %v657 = vmul.f32 %v655, 0.03125
          %v658 = vmul.f32 %v656, %v656
          %v659 = vsub.f32 %v657, %v658
          %v660 = vmax.f32 %v659, 0.0
          %v661 = vld [vmem:[%s2] sm:$0xff]
          %v662 = vadd.f32 %v660, 1e-05
          %v663 = vrsqrt.pop %v662
          %v664 = vmul.f32 %v661, %v663
          %v665 = vld [vmem:[%s3] sm:$0xff]
          %v666 = vmul.f32 %v656, %v664
          %v667 = vsub.f32 %v665, %v666
          %s668 = smul.u32 %s26, 8
          %s669 = scalar_lea.vmem [#allocation4], %s668
          %v670 = vld [vmem:[%s669] sm:$0xff]
          %672 = vset.pattern.permute.xlu0 0
          %673 = vperm.xlu0 %672, %v664
          %v674 = vpop.permute.xlu0 %673
          %v676 = vmul.f32 %v670, %v674
          %678 = vset.pattern.permute.xlu0 0
          %679 = vperm.xlu0 %678, %v667
          %v680 = vpop.permute.xlu0 %679
          %v682 = vadd.f32 %v676, %v680
          %v683 = vmax.f32 %v682, 0.0
          %v684 = vpack.c.bf16 %v683, %v683
          %v686 = vunpack.c.l.b16 %v684
          %v687 = vpack.c.b16 %v686, %v686
          %688 = vrot.lane.b32.xlu0 %v687, 2
          %v689 = vpop.permute.xlu0 %688
          %vm691 = vcmask 142352
          %692 = vst.msk [vmem:[#allocation3] sm:$0xf] %vm691, %v689
          %v693 = vld [vmem:[%s4] sm:$0xf]
          %v694 = vld [vmem:[#allocation3] sm:$0xf]
          %s695 = scalar_lea.vmem %s4, 4
          %v696 = vld [vmem:[%s695] sm:$0xf]
          %v698 = vunpack.c.l.b16 %v694
          %v699 = vpack.c.b16 %v698, %v698
          %700 = vrot.lane.b32.xlu0 %v699, 127
          %v701 = vpop.permute.xlu0 %700
          %vm702 = vcmask 64512
          %v704 = vsel %vm702, %v696, 0
          %vm706 = vcmask 1043456
          %v708 = vsel %vm706, %v701, 0
          %710 = vmatprep.subr.bf16.mxu0 0
          %711 = vmatpush1.bf16.msra.mxu0 %v708
          %712 = vmatprep.subr.bf16.mxu0 0
          %713 = vmatpush1.bf16.msra.mxu0 0
          %714 = vmatprep.subr.bf16.mxu0 0
          %715 = vmatpush1.bf16.msra.mxu0 0
          %716 = vmatprep.subr.bf16.mxu0 0
          %717 = vmatpush1.bf16.msra.mxu0 0
          %718 = vmatprep.subr.bf16.mxu0 0
          %719 = vmatpush1.bf16.msra.mxu0 0
          %720 = vmatprep.subr.bf16.mxu0 0
          %721 = vmatpush1.bf16.msra.mxu0 0
          %722 = vmatprep.subr.bf16.mxu0 0
          %723 = vmatpush1.bf16.msra.mxu0 0
          %724 = vmatprep.subr.bf16.mxu0 0
          %725 = vmatpush1.bf16.msra.mxu0 0
          %726 = vmatprep.subr.bf16.mxu0 0
          %727 = vmatpush1.bf16.msra.mxu0 0
          %728 = vmatprep.subr.bf16.mxu0 0
          %729 = vmatpush1.bf16.msra.mxu0 0
          %730 = vmatprep.subr.bf16.mxu0 0
          %731 = vmatpush1.bf16.msra.mxu0 0
          %732 = vmatprep.subr.bf16.mxu0 0
          %733 = vmatpush1.bf16.msra.mxu0 0
          %734 = vmatprep.subr.bf16.mxu0 0
          %735 = vmatpush1.bf16.msra.mxu0 0
          %736 = vmatprep.subr.bf16.mxu0 0
          %737 = vmatpush1.bf16.msra.mxu0 0
          %738 = vmatprep.subr.bf16.mxu0 0
          %739 = vmatpush1.bf16.msra.mxu0 0
          %740 = vmatprep.subr.bf16.mxu0 0
          %741 = vmatpush1.bf16.msra.mxu0 0
          %742 = vmatprep.mubr.bf16.mxu0 0
          %743 = vmatmul.mubr.bf16.gmra.mrb[0].mxu0 %v704
          %v744 = vpop.f32.mrb[0].mxu0
          %v745 = vadd.f32 0.0, %v744
          %v746 = vpop.f32.mrb[0].mxu0
          %v747 = vpop.f32.mrb[0].mxu0
          %v748 = vpop.f32.mrb[0].mxu0
          %749 = vdwg.mxu0
          %v751 = vsel %vm702, %v693, 0
          %v754 = vsel %vm706, %v694, 0
          %756 = vmatprep.subr.bf16.mxu0 0
          %757 = vmatpush1.bf16.msra.mxu0 %v754
          %758 = vmatprep.subr.bf16.mxu0 0
          %759 = vmatpush1.bf16.msra.mxu0 0
          %760 = vmatprep.subr.bf16.mxu0 0
          %761 = vmatpush1.bf16.msra.mxu0 0
          %762 = vmatprep.subr.bf16.mxu0 0
          %763 = vmatpush1.bf16.msra.mxu0 0
          %764 = vmatprep.subr.bf16.mxu0 0
          %765 = vmatpush1.bf16.msra.mxu0 0
          %766 = vmatprep.subr.bf16.mxu0 0
          %767 = vmatpush1.bf16.msra.mxu0 0
          %768 = vmatprep.subr.bf16.mxu0 0
          %769 = vmatpush1.bf16.msra.mxu0 0
          %770 = vmatprep.subr.bf16.mxu0 0
          %771 = vmatpush1.bf16.msra.mxu0 0
          %772 = vmatprep.subr.bf16.mxu0 0
          %773 = vmatpush1.bf16.msra.mxu0 0
          %774 = vmatprep.subr.bf16.mxu0 0
          %775 = vmatpush1.bf16.msra.mxu0 0
          %776 = vmatprep.subr.bf16.mxu0 0
          %777 = vmatpush1.bf16.msra.mxu0 0
          %778 = vmatprep.subr.bf16.mxu0 0
          %779 = vmatpush1.bf16.msra.mxu0 0
          %780 = vmatprep.subr.bf16.mxu0 0
          %781 = vmatpush1.bf16.msra.mxu0 0
          %782 = vmatprep.subr.bf16.mxu0 0
          %783 = vmatpush1.bf16.msra.mxu0 0
          %784 = vmatprep.subr.bf16.mxu0 0
          %785 = vmatpush1.bf16.msra.mxu0 0
          %786 = vmatprep.subr.bf16.mxu0 0
          %787 = vmatpush1.bf16.msra.mxu0 0
          %788 = vmatprep.mubr.bf16.mxu0 0
          %789 = vmatmul.mubr.bf16.gmra.mrb[0].mxu0 %v751
          %v790 = vpop.f32.mrb[0].mxu0
          %v791 = vadd.f32 %v745, %v790
          %v792 = vpop.f32.mrb[0].mxu0
          %v793 = vpop.f32.mrb[0].mxu0
          %v794 = vpop.f32.mrb[0].mxu0
          %795 = vdwg.mxu0
          %s796 = scalar_lea.vmem %s4, 8
          %v797 = vld [vmem:[%s796] sm:$0xf]
          %798 = vrot.lane.b32.xlu0 %v699, 126
          %v799 = vpop.permute.xlu0 %798
          %v801 = vsel %vm702, %v797, 0
          %v804 = vsel %vm706, %v799, 0
          %806 = vmatprep.subr.bf16.mxu0 0
          %807 = vmatpush1.bf16.msra.mxu0 %v804
          %808 = vmatprep.subr.bf16.mxu0 0
          %809 = vmatpush1.bf16.msra.mxu0 0
          %810 = vmatprep.subr.bf16.mxu0 0
          %811 = vmatpush1.bf16.msra.mxu0 0
          %812 = vmatprep.subr.bf16.mxu0 0
          %813 = vmatpush1.bf16.msra.mxu0 0
          %814 = vmatprep.subr.bf16.mxu0 0
          %815 = vmatpush1.bf16.msra.mxu0 0
          %816 = vmatprep.subr.bf16.mxu0 0
          %817 = vmatpush1.bf16.msra.mxu0 0
          %818 = vmatprep.subr.bf16.mxu0 0
          %819 = vmatpush1.bf16.msra.mxu0 0
          %820 = vmatprep.subr.bf16.mxu0 0
          %821 = vmatpush1.bf16.msra.mxu0 0
          %822 = vmatprep.subr.bf16.mxu0 0
          %823 = vmatpush1.bf16.msra.mxu0 0
          %824 = vmatprep.subr.bf16.mxu0 0
          %825 = vmatpush1.bf16.msra.mxu0 0
          %826 = vmatprep.subr.bf16.mxu0 0
          %827 = vmatpush1.bf16.msra.mxu0 0
          %828 = vmatprep.subr.bf16.mxu0 0
          %829 = vmatpush1.bf16.msra.mxu0 0
          %830 = vmatprep.subr.bf16.mxu0 0
          %831 = vmatpush1.bf16.msra.mxu0 0
          %832 = vmatprep.subr.bf16.mxu0 0
          %833 = vmatpush1.bf16.msra.mxu0 0
          %834 = vmatprep.subr.bf16.mxu0 0
          %835 = vmatpush1.bf16.msra.mxu0 0
          %836 = vmatprep.subr.bf16.mxu0 0
          %837 = vmatpush1.bf16.msra.mxu0 0
          %838 = vmatprep.mubr.bf16.mxu0 0
          %839 = vmatmul.mubr.bf16.gmra.mrb[0].mxu0 %v801
          %v840 = vpop.f32.mrb[0].mxu0
          %v841 = vadd.f32 0.0, %v840
          %v842 = vpop.f32.mrb[0].mxu0
          %v843 = vpop.f32.mrb[0].mxu0
          %v844 = vpop.f32.mrb[0].mxu0
          %845 = vdwg.mxu0
          %v846 = vadd.f32 %v791, %v841
          %s847 = scalar_lea.vmem %s4, 12
          %v848 = vld [vmem:[%s847] sm:$0xf]
          %849 = vrot.lane.b32.xlu0 %v699, 125
          %v850 = vpop.permute.xlu0 %849
          %v852 = vsel %vm702, %v848, 0
          %v855 = vsel %vm706, %v850, 0
          %857 = vmatprep.subr.bf16.mxu0 0
          %858 = vmatpush1.bf16.msra.mxu0 %v855
          %859 = vmatprep.subr.bf16.mxu0 0
          %860 = vmatpush1.bf16.msra.mxu0 0
          %861 = vmatprep.subr.bf16.mxu0 0
          %862 = vmatpush1.bf16.msra.mxu0 0
          %863 = vmatprep.subr.bf16.mxu0 0
          %864 = vmatpush1.bf16.msra.mxu0 0
          %865 = vmatprep.subr.bf16.mxu0 0
          %866 = vmatpush1.bf16.msra.mxu0 0
          %867 = vmatprep.subr.bf16.mxu0 0
          %868 = vmatpush1.bf16.msra.mxu0 0
          %869 = vmatprep.subr.bf16.mxu0 0
          %870 = vmatpush1.bf16.msra.mxu0 0
          %871 = vmatprep.subr.bf16.mxu0 0
          %872 = vmatpush1.bf16.msra.mxu0 0
          %873 = vmatprep.subr.bf16.mxu0 0
          %874 = vmatpush1.bf16.msra.mxu0 0
          %875 = vmatprep.subr.bf16.mxu0 0
          %876 = vmatpush1.bf16.msra.mxu0 0
          %877 = vmatprep.subr.bf16.mxu0 0
          %878 = vmatpush1.bf16.msra.mxu0 0
          %879 = vmatprep.subr.bf16.mxu0 0
          %880 = vmatpush1.bf16.msra.mxu0 0
          %881 = vmatprep.subr.bf16.mxu0 0
          %882 = vmatpush1.bf16.msra.mxu0 0
          %883 = vmatprep.subr.bf16.mxu0 0
          %884 = vmatpush1.bf16.msra.mxu0 0
          %885 = vmatprep.subr.bf16.mxu0 0
          %886 = vmatpush1.bf16.msra.mxu0 0
          %887 = vmatprep.subr.bf16.mxu0 0
          %888 = vmatpush1.bf16.msra.mxu0 0
          %889 = vmatprep.mubr.bf16.mxu0 0
          %890 = vmatmul.mubr.bf16.gmra.mrb[0].mxu0 %v852
          %v891 = vpop.f32.mrb[0].mxu0
          %v892 = vadd.f32 0.0, %v891
          %v893 = vpop.f32.mrb[0].mxu0
          %v894 = vpop.f32.mrb[0].mxu0
          %v895 = vpop.f32.mrb[0].mxu0
          %896 = vdwg.mxu0
          %v897 = vadd.f32 %v846, %v892
          %s898 = scalar_lea.vmem %s4, 16
          %v899 = vld [vmem:[%s898] sm:$0xf]
          %900 = vrot.lane.b32.xlu0 %v699, 124
          %v901 = vpop.permute.xlu0 %900
          %v903 = vsel %vm702, %v899, 0
          %v906 = vsel %vm706, %v901, 0
          %908 = vmatprep.subr.bf16.mxu0 0
          %909 = vmatpush1.bf16.msra.mxu0 %v906
          %910 = vmatprep.subr.bf16.mxu0 0
          %911 = vmatpush1.bf16.msra.mxu0 0
          %912 = vmatprep.subr.bf16.mxu0 0
          %913 = vmatpush1.bf16.msra.mxu0 0
          %914 = vmatprep.subr.bf16.mxu0 0
          %915 = vmatpush1.bf16.msra.mxu0 0
          %916 = vmatprep.subr.bf16.mxu0 0
          %917 = vmatpush1.bf16.msra.mxu0 0
          %918 = vmatprep.subr.bf16.mxu0 0
          %919 = vmatpush1.bf16.msra.mxu0 0
          %920 = vmatprep.subr.bf16.mxu0 0
          %921 = vmatpush1.bf16.msra.mxu0 0
          %922 = vmatprep.subr.bf16.mxu0 0
          %923 = vmatpush1.bf16.msra.mxu0 0
          %924 = vmatprep.subr.bf16.mxu0 0
          %925 = vmatpush1.bf16.msra.mxu0 0
          %926 = vmatprep.subr.bf16.mxu0 0
          %927 = vmatpush1.bf16.msra.mxu0 0
          %928 = vmatprep.subr.bf16.mxu0 0
          %929 = vmatpush1.bf16.msra.mxu0 0
          %930 = vmatprep.subr.bf16.mxu0 0
          %931 = vmatpush1.bf16.msra.mxu0 0
          %932 = vmatprep.subr.bf16.mxu0 0
          %933 = vmatpush1.bf16.msra.mxu0 0
          %934 = vmatprep.subr.bf16.mxu0 0
          %935 = vmatpush1.bf16.msra.mxu0 0
          %936 = vmatprep.subr.bf16.mxu0 0
          %937 = vmatpush1.bf16.msra.mxu0 0
          %938 = vmatprep.subr.bf16.mxu0 0
          %939 = vmatpush1.bf16.msra.mxu0 0
          %940 = vmatprep.mubr.bf16.mxu0 0
          %941 = vmatmul.mubr.bf16.gmra.mrb[0].mxu0 %v903
          %v942 = vpop.f32.mrb[0].mxu0
          %v943 = vadd.f32 0.0, %v942
          %v944 = vpop.f32.mrb[0].mxu0
          %v945 = vpop.f32.mrb[0].mxu0
          %v946 = vpop.f32.mrb[0].mxu0
          %947 = vdwg.mxu0
          %v948 = vadd.f32 %v897, %v943
          %s949 = scalar_lea.vmem [#allocation5], %s668
          %vm950 = vcmask 130048
          %951 = vst.msk [vmem:[%s949] sm:$0xff] %vm950, %v948
          %v952 = vld [vmem:[#allocation7] sm:$0xff]
          %v953 = vld [vmem:[#allocation7 + $0x8] sm:$0xff]
          %v954 = vmul.f32 %v948, %v948
          %v955 = vsel %vm950, %v948, 0.0
          %956 = vadd.xlane.f32.xlu0 %v955
          %v957 = vpop.xlane.xlu0 %956
          %v958 = vsel %vm950, %v954, 0.0
          %959 = vadd.xlane.f32.xlu0 %v958
          %v960 = vpop.xlane.xlu0 %959
          %v961 = vadd.f32 %v952, %v957
          %v962 = vadd.f32 %v953, %v960
          %vm963 = vcmask 7168
          %964 = vst.msk [vmem:[#allocation7] sm:$0xff] %vm963, %v961
          %965 = vst.msk [vmem:[#allocation7 + $0x8] sm:$0xff] %vm963, %v962
        $region60: #{double_conv.1} parent=47 // pred_fallthru
          _
        %p966 = scmp.eq.s32.totalorder %s25, 2
        // Predicated region
        $region61: #{double_conv.1} parent=47 // pred_check
          %p967 = pneg %p966
        $region62: #{double_conv.1} parent=47 // pred_check_branch
          %969 = sbr.rel (%p967) target = $region64
        $region63: #{double_conv.1} parent=47 // pred_region
          %v970 = vld [vmem:[#allocation7] sm:$0xff]
          %v971 = vld [vmem:[#allocation7 + $0x8] sm:$0xff]
          %v972 = vmul.f32 %v970, 0.03125
          %v973 = vmul.f32 %v971, 0.03125
          %v974 = vmul.f32 %v972, %v972
          %v975 = vsub.f32 %v973, %v974
          %v976 = vmax.f32 %v975, 0.0
          %v977 = vld [vmem:[%s5] sm:$0xff]
          %v978 = vadd.f32 %v976, 1e-05
          %v979 = vrsqrt.pop %v978
          %v980 = vmul.f32 %v977, %v979
          %v981 = vld [vmem:[%s6] sm:$0xff]
          %v982 = vmul.f32 %v972, %v980
          %v983 = vsub.f32 %v981, %v982
          %s984 = smul.u32 %s26, 8
          %s985 = scalar_lea.vmem [#allocation5], %s984
          %v986 = vld [vmem:[%s985] sm:$0xff]
          %988 = vset.pattern.permute.xlu0 0
          %989 = vperm.xlu0 %988, %v980
          %v990 = vpop.permute.xlu0 %989
          %v992 = vmul.f32 %v986, %v990
          %994 = vset.pattern.permute.xlu0 0
          %995 = vperm.xlu0 %994, %v983
          %v996 = vpop.permute.xlu0 %995
          %v998 = vadd.f32 %v992, %v996
          %v999 = vmax.f32 %v998, 0.0
          %vm1000 = vcmask 130048
          %1001 = vst.msk [vmem:[%s295] sm:$0xff] %vm1000, %v999
        $region64: #{double_conv.1} parent=47 // pred_fallthru
          _
        %s1002 = sand.u32 %s201, 1
        %s1003 = scalar_lea.sflag [#allocation9], %s1002
        %s1004 = sand.u32 %s201, 1
        %s1005 = smul.addr %s1004, 8
        %s1006 = scalar_lea.vmem [#allocation8], %s1005
        // Predicated region
        $region65: #{double_conv.1} parent=47 // pred_check
          %p1007 = pneg %p211
        $region66: #{double_conv.1} parent=47 // pred_check_branch
          %1009 = sbr.rel (%p1007) target = $region68
        $region67: #{double_conv.1} parent=47 // pred_region
          %p1010 = scmp.eq.s32.totalorder %s25, 2
          %s1011 = scalar_select %p1010, %s26, 0
          %s1013 = ssub.s32 128, 128
          %1014 = vsyncadd %s1003, %s1013
          %s1015 = smul.addr %s1011, 128
          %s1016 = scalar_lea.hbm %s7, %s1015
          %s1018 = sshll.u32 %s1006, 4
          %s1019 = int_to_ptr.vmem [resolvable:$true] %s1018
          %1021 = dma.vmem_to_hbm [thread:$0]  %s1019, 128, %s1016, %s1003
        $region68: #{double_conv.1} parent=47 // pred_fallthru
          _
      $region48: #{double_conv.1} parent=5 // pred_fallthru
        _
      %p1022 = scmp.le.s32.totalorder 2, %s16
      // Predicated region
      $region69: #{double_conv.1} parent=5 // pred_check
        %p1023 = pneg %p1022
      $region70: #{double_conv.1} parent=5 // pred_check_branch
        %1025 = sbr.rel (%p1023) target = $region72
      $region71: #{double_conv.1} parent=5 // pred_region
        %s1026 = ssub.s32 %s16, 2
        // Predicated region
        $region73: #{double_conv.1} parent=71 // pred_check
          %p1027 = pneg %p217
        $region74: #{double_conv.1} parent=71 // pred_check_branch
          %1029 = sbr.rel (%p1027) target = $region76
        $region75: #{double_conv.1} parent=71 // pred_region
          %s1030 = sand.u32 %s202, 1
          %s1031 = scalar_lea.sflag [#allocation9], %s1030
          %s1032 = sand.u32 %s202, 1
          %s1033 = smul.addr %s1032, 8
          %s1034 = scalar_lea.vmem [#allocation8], %s1033
          %1035 = dma.done %s1031, 128
        $region76: #{double_conv.1} parent=71 // pred_fallthru
          _
      $region72: #{double_conv.1} parent=5 // pred_fallthru
        _
    $region6: #{double_conv.1} parent=1 // loop_footer
      %s20 = sadd.s32 1, %s16
    $region7: #{double_conv.1} parent=1 // loop_footer_branch
      %15 = sbr.rel target = $region3
    $region8: #{double_conv.1} parent=1 // loop_exit
      _
    %1036 = vsyncpa [#allocation9], 1
    %s1037 = scalar_lea.sflag [#allocation9], 1
    %1038 = vsyncpa %s1037, 1

</llo_original>
